<compile_context>
chip_gen: v7x
topology: tpu7x:2x2x1
jax: 0.10.0
libtpu: 0.0.40
codegen_flags: <defaults>
</compile_context>

<pallas_src>
import functools
import math

import jax
import jax.numpy as jnp
from jax.experimental import pallas as pl
from jax.experimental.pallas import tpu as pltpu


# ------------------------------ helpers --------------------------------------

def _round_up(x, m):
    return ((x + m - 1) // m) * m


def _make_conv_kernel(k, wp, mp):
    """Tap-shift conv kernel for static (kernel_size, padded_width, out_lanes)."""
    shifts = [ih * wp + iw for ih in range(k) for iw in range(k)]

    def kernel(x_ref, w_ref, b_ref, o_ref):
        # x_ref: (C_in, Lp)      zero-padded, flattened activation for one (g, n)
        # w_ref: (k*k, C_out, C_in) per-matrix weight taps
        # b_ref: (C_out, 1)      bias
        # o_ref: (C_out, Mp)     stride-1 "wide" conv output (padded-width grid)
        acc = None
        for t, shift in enumerate(shifts):
            x_tap = x_ref[:, pl.ds(shift, mp)]          # (C_in, Mp) lane slice
            w_tap = w_ref[t]                            # (C_out, C_in)
            part = jnp.dot(w_tap, x_tap, preferred_element_type=jnp.float32)
            acc = part if acc is None else acc + part
        o_ref[...] = (acc + b_ref[...]).astype(o_ref.dtype)

    return kernel


# ------------------------------ fused forward --------------------------------

@functools.partial(jax.jit, static_argnames=("kernel_size", "stride", "use_bf16"))
def _fused_forward(x_all, w_all, b_all, *, kernel_size, stride, use_bf16=False):
    """Fused conv over all similarity matrices.

    x_all: (G, N, C_in, H, W)      stacked NCHW inputs
    w_all: (G, C_out, C_in, k, k)  PyTorch-layout weights
    b_all: (G, C_out)
    returns (G, N, C_out, H_out, W_out)
    """
    g, n, c_in, h, w = x_all.shape
    c_out = w_all.shape[1]
    k, s = kernel_size, stride

    in_dtype = jnp.bfloat16 if use_bf16 else jnp.float32
    # Cast BEFORE the prologue so pad/reshape run at half width in bf16 mode.
    x_all = x_all.astype(in_dtype)

    # ZeroPad2d semantics from CNNLayerV1.__init__ ((left, right, top, bottom)).
    p = (k - 1) // 2
    extra = 1 if k % 2 == 0 else 0
    xp = jnp.pad(x_all, ((0, 0), (0, 0), (0, 0), (p, p + extra), (p, p + extra)))
    hp, wp = h + 2 * p + extra, w + 2 * p + extra
    ho = (hp - k) // s + 1
    wo = (wp - k) // s + 1

    # "Wide" stride-1 output over the padded-width flat grid: the value for
    # output (r, c) lives at flat index r*Wp + c; valid strided outputs are
    # (r, c) = (ho*s, wo*s) and are sliced out after the kernel.  The extra
    # columns (c >= (Wo-1)*s+1) and rounding tail are garbage and discarded.
    r_rows = (ho - 1) * s + 1
    m_needed = r_rows * wp
    mp = _round_up(m_needed, 128)              # lane-dense output width
    max_shift = (k - 1) * (wp + 1)             # largest tap offset
    lp = _round_up(max(hp * wp, mp + max_shift), 128)

    x_flat = xp.reshape(g, n, c_in, hp * wp)                      # free reshape
    x_flat = jnp.pad(x_flat, ((0, 0), (0, 0), (0, 0), (0, lp - hp * wp)))

    # (G, k*k, C_out, C_in) weight taps (tiny) and (G, C_out, 1) bias.
    w_taps = jnp.transpose(w_all, (0, 3, 4, 1, 2)).reshape(g, k * k, c_out, c_in)
    w_taps = w_taps.astype(in_dtype)
    b_gemm = b_all.reshape(g, c_out, 1).astype(jnp.float32)

    kernel = _make_conv_kernel(k, wp, mp)

    # VMEM budget (double-buffered blocks), capped for v7x's 64 MiB physical.
    itemsize = 2 if use_bf16 else 4
    block_bytes = (c_in * lp * itemsize            # activation slab
                   + k * k * c_out * c_in * itemsize
                   + c_out * 4                     # bias
                   + c_out * mp * 4)               # output block
    vmem_limit = int(min(48 * 2 ** 20, max(32 * 2 ** 20, 4 * block_bytes)))

    out_wide = pl.pallas_call(
        kernel,
        out_shape=jax.ShapeDtypeStruct((g, n, c_out, mp), jnp.float32),
        grid=(g, n),
        in_specs=[
            # flattened padded activation for (matrix gi, batch ni)
            pl.BlockSpec((None, None, c_in, lp), lambda gi, ni: (gi, ni, 0, 0)),
            # per-matrix weight taps (constant across ni -> no re-DMA)
            pl.BlockSpec((None, k * k, c_out, c_in), lambda gi, ni: (gi, 0, 0, 0)),
            # per-matrix bias
            pl.BlockSpec((None, c_out, 1), lambda gi, ni: (gi, 0, 0)),
        ],
        out_specs=pl.BlockSpec((None, None, c_out, mp),
                               lambda gi, ni: (gi, ni, 0, 0)),
        compiler_params=pltpu.CompilerParams(
            dimension_semantics=("parallel", "parallel"),
            vmem_limit_bytes=vmem_limit),
    )(x_flat, w_taps, b_gemm)

    # Drop padded-width garbage columns / rounding tail; pick strided outputs.
    out_rows = out_wide[..., : r_rows * wp].reshape(g, n, c_out, r_rows, wp)
    out = out_rows[..., 0:(ho - 1) * s + 1:s, 0:(wo - 1) * s + 1:s]
    return out                                                    # (G,N,C_out,Ho,Wo)


# --------------------------------- module -------------------------------------

class CNNLayerV1Pallas:
    """JAX/Pallas port of CNNLayerV1. Inputs/outputs are NCHW like PyTorch."""

    def __init__(self, kernel_size, stride, in_channels, out_channels,
                 num_similarity_matrices, key, use_bf16=False):
        self.kernel_size = kernel_size
        self.stride = stride
        self.in_channels = in_channels
        self.out_channels = out_channels
        self.num_similarity_matrices = num_similarity_matrices
        self.use_bf16 = use_bf16

        # Deterministic init mimicking torch.nn.Conv2d defaults
        # (uniform bound = 1/sqrt(fan_in) for both weight and bias).
        fan_in = in_channels * kernel_size * kernel_size
        bound = 1.0 / math.sqrt(fan_in)
        ws, bs = [], []
        for _ in range(num_similarity_matrices):
            key, kw_, kb_ = jax.random.split(key, 3)
            ws.append(jax.random.uniform(
                kw_, (out_channels, in_channels, kernel_size, kernel_size),
                dtype=jnp.float32, minval=-bound, maxval=bound))
            bs.append(jax.random.uniform(
                kb_, (out_channels,), dtype=jnp.float32,
                minval=-bound, maxval=bound))
        self.weights = jnp.stack(ws, axis=0)   # (G, C_out, C_in, k, k)
        self.biases = jnp.stack(bs, axis=0)    # (G, C_out)

    def __call__(self, similarity_matrices_list):
        shapes = {tuple(x.shape) for x in similarity_matrices_list}
        if len(shapes) == 1:
            x_all = jnp.stack(similarity_matrices_list, axis=0)
            out = _fused_forward(x_all, self.weights, self.biases,
                                 kernel_size=self.kernel_size,
                                 stride=self.stride, use_bf16=self.use_bf16)
            return [out[i] for i in range(self.num_similarity_matrices)]
        # Fallback when per-matrix shapes differ (rare): same fused path,
        # one matrix at a time.
        result = []
        for i in range(self.num_similarity_matrices):
            out = _fused_forward(similarity_matrices_list[i][None],
                                 self.weights[i:i + 1], self.biases[i:i + 1],
                                 kernel_size=self.kernel_size,
                                 stride=self.stride, use_bf16=self.use_bf16)
            result.append(out[0])
        return result


# ------------------------------ reference -------------------------------------

def _reference_conv(x_nchw, w_pt, b, kernel_size, stride):
    p = (kernel_size - 1) // 2
    if kernel_size % 2 == 0:
        pads_h, pads_w = (p, p + 1), (p, p + 1)
    else:
        pads_h, pads_w = (p, p), (p, p)
    xp = jnp.pad(x_nchw, ((0, 0), (0, 0), pads_h, pads_w))
    out = jax.lax.conv_general_dilated(
        xp, w_pt, window_strides=(stride, stride), padding="VALID",
        dimension_numbers=("NCHW", "OIHW", "NCHW"))
    return out + b.reshape(1, -1, 1, 1)


# --------------------------------- main ----------------------------------------

if __name__ == "__main__":
    key = jax.random.PRNGKey(0)

    # Small shapes consistent with the module.
    batch, in_channels, spatial = 2, 4, 16
    out_channels, kernel_size, stride = 8, 3, 1
    num_similarity_matrices = 2

    key, k_model, *k_inputs = jax.random.split(key, 2 + num_similarity_matrices)
    layer = CNNLayerV1Pallas(kernel_size, stride, in_channels, out_channels,
                             num_similarity_matrices, k_model)

    sims = [
        jax.random.normal(k_inputs[i], (batch, in_channels, spatial, spatial),
                          dtype=jnp.float32)
        for i in range(num_similarity_matrices)
    ]

    outs = layer(sims)
    outs = [jax.block_until_ready(o) for o in outs]

    # Correctness check against XLA's conv.
    for i in range(num_similarity_matrices):
        ref = _reference_conv(sims[i], layer.weights[i], layer.biases[i],
                              kernel_size, stride)
        assert outs[i].shape == ref.shape, (outs[i].shape, ref.shape)
        assert jnp.allclose(outs[i], ref, atol=1e-4, rtol=1e-4), (
            f"mismatch on matrix {i}")

    print("KERNEL_OK")
</pallas_src>

<mosaic_0001>
module attributes {stable_mosaic.version = 11 : i64} {
  func.func @kernel(%arg0: i32, %arg1: i32, %arg2: memref<1x1x4x512xf32, #tpu.memory_space<vmem>>, %arg3: memref<1x9x8x4xf32, #tpu.memory_space<vmem>>, %arg4: memref<1x8x1xf32, #tpu.memory_space<vmem>>, %arg5: memref<1x1x8x384xf32, #tpu.memory_space<vmem>>) attributes {dimension_semantics = [#tpu.dimension_semantics<parallel>, #tpu.dimension_semantics<parallel>], iteration_bounds = array<i64: 2, 2>, scalar_prefetch = 0 : i64, scratch_operands = 0 : i64, tpu.core_type = #tpu.core_type<tc>, window_params = [{transform_indices = @transform_0, window_bounds = array<i64: 1, 1, 4, 512>}, {transform_indices = @transform_1, window_bounds = array<i64: 1, 9, 8, 4>}, {transform_indices = @transform_2, window_bounds = array<i64: 1, 8, 1>}, {transform_indices = @transform_3, window_bounds = array<i64: 1, 1, 8, 384>}]} {
    %c0 = arith.constant 0 : index
    %c0_0 = arith.constant 0 : index
    %c0_1 = arith.constant 0 : index
    %c0_2 = arith.constant 0 : index
    %0 = vector.load %arg2[%c0, %c0_0, %c0_1, %c0_2] : memref<1x1x4x512xf32, #tpu.memory_space<vmem>>, vector<1x1x4x384xf32>
    %1 = vector.shape_cast %0 : vector<1x1x4x384xf32> to vector<4x384xf32>
    %c0_3 = arith.constant 0 : index
    %c0_4 = arith.constant 0 : index
    %c0_5 = arith.constant 0 : index
    %c0_6 = arith.constant 0 : index
    %2 = vector.load %arg3[%c0_3, %c0_4, %c0_5, %c0_6] : memref<1x9x8x4xf32, #tpu.memory_space<vmem>>, vector<1x1x8x4xf32>
    %3 = vector.shape_cast %2 : vector<1x1x8x4xf32> to vector<8x4xf32>
    %cst = arith.constant dense<0.000000e+00> : vector<8x384xf32>
    %4 = tpu.matmul %3, %1, %cst {dimension_numbers = #tpu.dot_dimension_numbers<[1], [0], [0], [1], [0, 0, 1, 1], [], []>} : vector<8x4xf32>, vector<4x384xf32>, vector<8x384xf32> -> vector<8x384xf32>
    %c0_7 = arith.constant 0 : index
    %c0_8 = arith.constant 0 : index
    %c0_9 = arith.constant 0 : index
    %c1 = arith.constant 1 : index
    %5 = vector.load %arg2[%c0_7, %c0_8, %c0_9, %c1] : memref<1x1x4x512xf32, #tpu.memory_space<vmem>>, vector<1x1x4x384xf32>
    %6 = vector.shape_cast %5 : vector<1x1x4x384xf32> to vector<4x384xf32>
    %c0_10 = arith.constant 0 : index
    %c1_11 = arith.constant 1 : index
    %c0_12 = arith.constant 0 : index
    %c0_13 = arith.constant 0 : index
    %7 = vector.load %arg3[%c0_10, %c1_11, %c0_12, %c0_13] : memref<1x9x8x4xf32, #tpu.memory_space<vmem>>, vector<1x1x8x4xf32>
    %8 = vector.shape_cast %7 : vector<1x1x8x4xf32> to vector<8x4xf32>
    %cst_14 = arith.constant dense<0.000000e+00> : vector<8x384xf32>
    %9 = tpu.matmul %8, %6, %cst_14 {dimension_numbers = #tpu.dot_dimension_numbers<[1], [0], [0], [1], [0, 0, 1, 1], [], []>} : vector<8x4xf32>, vector<4x384xf32>, vector<8x384xf32> -> vector<8x384xf32>
    %10 = arith.addf %4, %9 : vector<8x384xf32>
    %c0_15 = arith.constant 0 : index
    %c0_16 = arith.constant 0 : index
    %c0_17 = arith.constant 0 : index
    %c2 = arith.constant 2 : index
    %11 = vector.load %arg2[%c0_15, %c0_16, %c0_17, %c2] : memref<1x1x4x512xf32, #tpu.memory_space<vmem>>, vector<1x1x4x384xf32>
    %12 = vector.shape_cast %11 : vector<1x1x4x384xf32> to vector<4x384xf32>
    %c0_18 = arith.constant 0 : index
    %c2_19 = arith.constant 2 : index
    %c0_20 = arith.constant 0 : index
    %c0_21 = arith.constant 0 : index
    %13 = vector.load %arg3[%c0_18, %c2_19, %c0_20, %c0_21] : memref<1x9x8x4xf32, #tpu.memory_space<vmem>>, vector<1x1x8x4xf32>
    %14 = vector.shape_cast %13 : vector<1x1x8x4xf32> to vector<8x4xf32>
    %cst_22 = arith.constant dense<0.000000e+00> : vector<8x384xf32>
    %15 = tpu.matmul %14, %12, %cst_22 {dimension_numbers = #tpu.dot_dimension_numbers<[1], [0], [0], [1], [0, 0, 1, 1], [], []>} : vector<8x4xf32>, vector<4x384xf32>, vector<8x384xf32> -> vector<8x384xf32>
    %16 = arith.addf %10, %15 : vector<8x384xf32>
    %c0_23 = arith.constant 0 : index
    %c0_24 = arith.constant 0 : index
    %c0_25 = arith.constant 0 : index
    %c18 = arith.constant 18 : index
    %17 = vector.load %arg2[%c0_23, %c0_24, %c0_25, %c18] : memref<1x1x4x512xf32, #tpu.memory_space<vmem>>, vector<1x1x4x384xf32>
    %18 = vector.shape_cast %17 : vector<1x1x4x384xf32> to vector<4x384xf32>
    %c0_26 = arith.constant 0 : index
    %c3 = arith.constant 3 : index
    %c0_27 = arith.constant 0 : index
    %c0_28 = arith.constant 0 : index
    %19 = vector.load %arg3[%c0_26, %c3, %c0_27, %c0_28] : memref<1x9x8x4xf32, #tpu.memory_space<vmem>>, vector<1x1x8x4xf32>
    %20 = vector.shape_cast %19 : vector<1x1x8x4xf32> to vector<8x4xf32>
    %cst_29 = arith.constant dense<0.000000e+00> : vector<8x384xf32>
    %21 = tpu.matmul %20, %18, %cst_29 {dimension_numbers = #tpu.dot_dimension_numbers<[1], [0], [0], [1], [0, 0, 1, 1], [], []>} : vector<8x4xf32>, vector<4x384xf32>, vector<8x384xf32> -> vector<8x384xf32>
    %22 = arith.addf %16, %21 : vector<8x384xf32>
    %c0_30 = arith.constant 0 : index
    %c0_31 = arith.constant 0 : index
    %c0_32 = arith.constant 0 : index
    %c19 = arith.constant 19 : index
    %23 = vector.load %arg2[%c0_30, %c0_31, %c0_32, %c19] : memref<1x1x4x512xf32, #tpu.memory_space<vmem>>, vector<1x1x4x384xf32>
    %24 = vector.shape_cast %23 : vector<1x1x4x384xf32> to vector<4x384xf32>
    %c0_33 = arith.constant 0 : index
    %c4 = arith.constant 4 : index
    %c0_34 = arith.constant 0 : index
    %c0_35 = arith.constant 0 : index
    %25 = vector.load %arg3[%c0_33, %c4, %c0_34, %c0_35] : memref<1x9x8x4xf32, #tpu.memory_space<vmem>>, vector<1x1x8x4xf32>
    %26 = vector.shape_cast %25 : vector<1x1x8x4xf32> to vector<8x4xf32>
    %cst_36 = arith.constant dense<0.000000e+00> : vector<8x384xf32>
    %27 = tpu.matmul %26, %24, %cst_36 {dimension_numbers = #tpu.dot_dimension_numbers<[1], [0], [0], [1], [0, 0, 1, 1], [], []>} : vector<8x4xf32>, vector<4x384xf32>, vector<8x384xf32> -> vector<8x384xf32>
    %28 = arith.addf %22, %27 : vector<8x384xf32>
    %c0_37 = arith.constant 0 : index
    %c0_38 = arith.constant 0 : index
    %c0_39 = arith.constant 0 : index
    %c20 = arith.constant 20 : index
    %29 = vector.load %arg2[%c0_37, %c0_38, %c0_39, %c20] : memref<1x1x4x512xf32, #tpu.memory_space<vmem>>, vector<1x1x4x384xf32>
    %30 = vector.shape_cast %29 : vector<1x1x4x384xf32> to vector<4x384xf32>
    %c0_40 = arith.constant 0 : index
    %c5 = arith.constant 5 : index
    %c0_41 = arith.constant 0 : index
    %c0_42 = arith.constant 0 : index
    %31 = vector.load %arg3[%c0_40, %c5, %c0_41, %c0_42] : memref<1x9x8x4xf32, #tpu.memory_space<vmem>>, vector<1x1x8x4xf32>
    %32 = vector.shape_cast %31 : vector<1x1x8x4xf32> to vector<8x4xf32>
    %cst_43 = arith.constant dense<0.000000e+00> : vector<8x384xf32>
    %33 = tpu.matmul %32, %30, %cst_43 {dimension_numbers = #tpu.dot_dimension_numbers<[1], [0], [0], [1], [0, 0, 1, 1], [], []>} : vector<8x4xf32>, vector<4x384xf32>, vector<8x384xf32> -> vector<8x384xf32>
    %34 = arith.addf %28, %33 : vector<8x384xf32>
    %c0_44 = arith.constant 0 : index
    %c0_45 = arith.constant 0 : index
    %c0_46 = arith.constant 0 : index
    %c36 = arith.constant 36 : index
    %35 = vector.load %arg2[%c0_44, %c0_45, %c0_46, %c36] : memref<1x1x4x512xf32, #tpu.memory_space<vmem>>, vector<1x1x4x384xf32>
    %36 = vector.shape_cast %35 : vector<1x1x4x384xf32> to vector<4x384xf32>
    %c0_47 = arith.constant 0 : index
    %c6 = arith.constant 6 : index
    %c0_48 = arith.constant 0 : index
    %c0_49 = arith.constant 0 : index
    %37 = vector.load %arg3[%c0_47, %c6, %c0_48, %c0_49] : memref<1x9x8x4xf32, #tpu.memory_space<vmem>>, vector<1x1x8x4xf32>
    %38 = vector.shape_cast %37 : vector<1x1x8x4xf32> to vector<8x4xf32>
    %cst_50 = arith.constant dense<0.000000e+00> : vector<8x384xf32>
    %39 = tpu.matmul %38, %36, %cst_50 {dimension_numbers = #tpu.dot_dimension_numbers<[1], [0], [0], [1], [0, 0, 1, 1], [], []>} : vector<8x4xf32>, vector<4x384xf32>, vector<8x384xf32> -> vector<8x384xf32>
    %40 = arith.addf %34, %39 : vector<8x384xf32>
    %c0_51 = arith.constant 0 : index
    %c0_52 = arith.constant 0 : index
    %c0_53 = arith.constant 0 : index
    %c37 = arith.constant 37 : index
    %41 = vector.load %arg2[%c0_51, %c0_52, %c0_53, %c37] : memref<1x1x4x512xf32, #tpu.memory_space<vmem>>, vector<1x1x4x384xf32>
    %42 = vector.shape_cast %41 : vector<1x1x4x384xf32> to vector<4x384xf32>
    %c0_54 = arith.constant 0 : index
    %c7 = arith.constant 7 : index
    %c0_55 = arith.constant 0 : index
    %c0_56 = arith.constant 0 : index
    %43 = vector.load %arg3[%c0_54, %c7, %c0_55, %c0_56] : memref<1x9x8x4xf32, #tpu.memory_space<vmem>>, vector<1x1x8x4xf32>
    %44 = vector.shape_cast %43 : vector<1x1x8x4xf32> to vector<8x4xf32>
    %cst_57 = arith.constant dense<0.000000e+00> : vector<8x384xf32>
    %45 = tpu.matmul %44, %42, %cst_57 {dimension_numbers = #tpu.dot_dimension_numbers<[1], [0], [0], [1], [0, 0, 1, 1], [], []>} : vector<8x4xf32>, vector<4x384xf32>, vector<8x384xf32> -> vector<8x384xf32>
    %46 = arith.addf %40, %45 : vector<8x384xf32>
    %c0_58 = arith.constant 0 : index
    %c0_59 = arith.constant 0 : index
    %c0_60 = arith.constant 0 : index
    %c38 = arith.constant 38 : index
    %47 = vector.load %arg2[%c0_58, %c0_59, %c0_60, %c38] : memref<1x1x4x512xf32, #tpu.memory_space<vmem>>, vector<1x1x4x384xf32>
    %48 = vector.shape_cast %47 : vector<1x1x4x384xf32> to vector<4x384xf32>
    %c0_61 = arith.constant 0 : index
    %c8 = arith.constant 8 : index
    %c0_62 = arith.constant 0 : index
    %c0_63 = arith.constant 0 : index
    %49 = vector.load %arg3[%c0_61, %c8, %c0_62, %c0_63] : memref<1x9x8x4xf32, #tpu.memory_space<vmem>>, vector<1x1x8x4xf32>
    %50 = vector.shape_cast %49 : vector<1x1x8x4xf32> to vector<8x4xf32>
    %cst_64 = arith.constant dense<0.000000e+00> : vector<8x384xf32>
    %51 = tpu.matmul %50, %48, %cst_64 {dimension_numbers = #tpu.dot_dimension_numbers<[1], [0], [0], [1], [0, 0, 1, 1], [], []>} : vector<8x4xf32>, vector<4x384xf32>, vector<8x384xf32> -> vector<8x384xf32>
    %52 = arith.addf %46, %51 : vector<8x384xf32>
    %c0_65 = arith.constant 0 : index
    %c0_66 = arith.constant 0 : index
    %c0_67 = arith.constant 0 : index
    %53 = vector.load %arg4[%c0_65, %c0_66, %c0_67] : memref<1x8x1xf32, #tpu.memory_space<vmem>>, vector<1x8x1xf32>
    %54 = vector.shape_cast %53 : vector<1x8x1xf32> to vector<8x1xf32>
    %55 = vector.broadcast %54 : vector<8x1xf32> to vector<8x384xf32>
    %56 = arith.addf %52, %55 : vector<8x384xf32>
    %c0_68 = arith.constant 0 : index
    %c0_69 = arith.constant 0 : index
    %c0_70 = arith.constant 0 : index
    %c0_71 = arith.constant 0 : index
    %57 = vector.load %arg5[%c0_68, %c0_69, %c0_70, %c0_71] : memref<1x1x8x384xf32, #tpu.memory_space<vmem>>, vector<1x1x8x384xf32>
    %58 = vector.shape_cast %57 : vector<1x1x8x384xf32> to vector<8x384xf32>
    %59 = vector.shape_cast %56 : vector<8x384xf32> to vector<1x1x8x384xf32>
    tpu.vector_store %arg5[%c0_68, %c0_69, %c0_70, %c0_71], %59 {strides = array<i32>} : memref<1x1x8x384xf32, #tpu.memory_space<vmem>>, vector<1x1x8x384xf32>,
    return
  }
  func.func @transform_0(%arg0: i32, %arg1: i32) -> (i32, i32, i32, i32) {
    %c0_i32 = arith.constant 0 : i32
    %c0_i32_0 = arith.constant 0 : i32
    %c0_i32_1 = arith.constant 0 : i32
    return %arg0, %arg1, %c0_i32, %c0_i32_0 : i32, i32, i32, i32
  }
  func.func @transform_1(%arg0: i32, %arg1: i32) -> (i32, i32, i32, i32) {
    %c0_i32 = arith.constant 0 : i32
    %c0_i32_0 = arith.constant 0 : i32
    %c0_i32_1 = arith.constant 0 : i32
    %c0_i32_2 = arith.constant 0 : i32
    return %arg0, %c0_i32, %c0_i32_0, %c0_i32_1 : i32, i32, i32, i32
  }
  func.func @transform_2(%arg0: i32, %arg1: i32) -> (i32, i32, i32) {
    %c0_i32 = arith.constant 0 : i32
    %c0_i32_0 = arith.constant 0 : i32
    %c0_i32_1 = arith.constant 0 : i32
    return %arg0, %c0_i32, %c0_i32_0 : i32, i32, i32
  }
  func.func @transform_3(%arg0: i32, %arg1: i32) -> (i32, i32, i32, i32) {
    %c0_i32 = arith.constant 0 : i32
    %c0_i32_0 = arith.constant 0 : i32
    %c0_i32_1 = arith.constant 0 : i32
    return %arg0, %arg1, %c0_i32, %c0_i32_0 : i32, i32, i32, i32
  }
}

</mosaic_0001>

<llo_original>
// kernel: _fused_forward.1
$region0: #{_fused_forward.1}
  #allocation0 [shape = 'u32[]', space=smem, size = 0x4, offset = 0x4, fixed_abs, tag = 'smem constant byte address 0x4 - core index']
  #allocation1 [shape = 'u32[144,128]{1,0:T(1,128)}', space=vmem, size = 0x12000, scoped, tag = 'internal scratch']
  %s0 = inlined_call_operand.vmem [shape: f32[2,2,4,512], index: 0, kind: input, shape index: {}]
  %s1 = inlined_call_operand.vmem [shape: f32[2,9,8,4], index: 1, kind: input, shape index: {}]
  %s2 = inlined_call_operand.vmem [shape: f32[2,8,1], index: 2, kind: input, shape index: {}]
  %s3 = inlined_call_operand.vmem [shape: f32[2,2,8,384], index: 3, kind: output, shape index: {}]
  %s4 = sld [smem:[#allocation0]]
  $region45: #{_fused_forward.1} parent=0
    _
  %s6 = ssub.s32 1, %s4
  %s7 = scalar_select 0, %s6, %s4
  loop: start=0, step=1, limit=6
  $region2: #{_fused_forward.1} parent=0 // loop_pre_header
    _
  $region3: #{_fused_forward.1} parent=0 // loop_header
    %s9 = sphi 0, %s13
    %p10 = scmp.ge.s32.totalorder %s9, 6
    %s16 = sphi 0, %s28
    %s17 = sphi 0, %s24
    %s18 = sphi 0, %s16
    %s19 = sphi 0, %s17
    %s20 = sphi 0, %s18
    %s21 = sphi 0, %s19
    %s33 = sphi 0, %s35
    %s36 = sphi 0, %s33
    %s37 = sphi 0, %s36
    %s53 = sphi 0, %s37
    %s59 = sphi 0, %s61
    %s62 = sphi 0, %s59
    %s63 = sphi 0, %s62
    %s79 = sphi 0, %s63
    %s85 = sphi 0, %s87
    %s88 = sphi 0, %s85
    %s89 = sphi 0, %s88
    %s105 = sphi 0, %s89
    %s113 = sphi 0, %s115
    %s116 = sphi 0, %s113
    %s117 = sphi 0, %s116
    %s133 = sphi 0, %s117
  $region4: #{_fused_forward.1} parent=0 // loop_header_branch
    %12 = sbr.rel (%p10) target = $region8
  $region5: #{_fused_forward.1} parent=0 // loop_body
    %s14 = ssub.s32 %s9, 1
    %s15 = ssub.s32 %s9, 2
    %s22 = sadd.s32 1, %s17
    %p23 = scmp.ge.s32.totalorder %s22, 2
    %s24 = scalar_select %p23, 0, %s22
    %s25 = sadd.s32 1, %s16
    %s26 = scalar_select %p23, %s25, %s16
    %p27 = scmp.ge.s32.totalorder %s26, 2
    %s28 = scalar_select %p27, 0, %s26
    %s29 = ssub.s32 %s16, %s28
    %s30 = ssub.s32 %s17, %s24
    %s31 = sor.u32 %s29, %s30
    %p32 = scmp.eq.s32.totalorder %s31, 0
    %s34 = sadd.s32 %s33, 1
    %s35 = scalar_select %p32, %s33, %s34
    %p38 = pneg %p32
    %p39 = scmp.eq.s32.totalorder %s9, 3
    %p40 = por %p38, %p39
    %p41 = scmp.ne.s32.totalorder %s33, %s36
    %p42 = scmp.eq.s32.totalorder %s9, 0
    %p43 = por %p41, %p42
    %p44 = scmp.ne.s32.totalorder %s33, %s36
    %p45 = scmp.eq.s32.totalorder %s14, 3
    %p46 = por %p44, %p45
    %p47 = scmp.ne.s32.totalorder %s36, %s37
    %p48 = scmp.eq.s32.totalorder %s14, 0
    %p49 = por %p47, %p48
    %p50 = scmp.ne.s32.totalorder %s36, %s37
    %p51 = scmp.eq.s32.totalorder %s15, 3
    %p52 = por %p50, %p51
    %p54 = scmp.ne.s32.totalorder %s37, %s53
    %p55 = scmp.eq.s32.totalorder %s15, 0
    %p56 = por %p54, %p55
    %s57 = ssub.s32 %s16, %s28
    %p58 = scmp.eq.s32.totalorder %s57, 0
    %s60 = sadd.s32 %s59, 1
    %s61 = scalar_select %p58, %s59, %s60
    %p64 = pneg %p58
    %p65 = scmp.eq.s32.totalorder %s9, 3
    %p66 = por %p64, %p65
    %p67 = scmp.ne.s32.totalorder %s59, %s62
    %p68 = scmp.eq.s32.totalorder %s9, 0
    %p69 = por %p67, %p68
    %p70 = scmp.ne.s32.totalorder %s59, %s62
    %p71 = scmp.eq.s32.totalorder %s14, 3
    %p72 = por %p70, %p71
    %p73 = scmp.ne.s32.totalorder %s62, %s63
    %p74 = scmp.eq.s32.totalorder %s14, 0
    %p75 = por %p73, %p74
    %p76 = scmp.ne.s32.totalorder %s62, %s63
    %p77 = scmp.eq.s32.totalorder %s15, 3
    %p78 = por %p76, %p77
    %p80 = scmp.ne.s32.totalorder %s63, %s79
    %p81 = scmp.eq.s32.totalorder %s15, 0
    %p82 = por %p80, %p81
    %s83 = ssub.s32 %s16, %s28
    %p84 = scmp.eq.s32.totalorder %s83, 0
    %s86 = sadd.s32 %s85, 1
    %s87 = scalar_select %p84, %s85, %s86
    %p90 = pneg %p84
    %p91 = scmp.eq.s32.totalorder %s9, 3
    %p92 = por %p90, %p91
    %p93 = scmp.ne.s32.totalorder %s85, %s88
    %p94 = scmp.eq.s32.totalorder %s9, 0
    %p95 = por %p93, %p94
    %p96 = scmp.ne.s32.totalorder %s85, %s88
    %p97 = scmp.eq.s32.totalorder %s14, 3
    %p98 = por %p96, %p97
    %p99 = scmp.ne.s32.totalorder %s88, %s89
    %p100 = scmp.eq.s32.totalorder %s14, 0
    %p101 = por %p99, %p100
    %p102 = scmp.ne.s32.totalorder %s88, %s89
    %p103 = scmp.eq.s32.totalorder %s15, 3
    %p104 = por %p102, %p103
    %p106 = scmp.ne.s32.totalorder %s89, %s105
    %p107 = scmp.eq.s32.totalorder %s15, 0
    %p108 = por %p106, %p107
    %s109 = ssub.s32 %s16, %s28
    %s110 = ssub.s32 %s17, %s24
    %s111 = sor.u32 %s109, %s110
    %p112 = scmp.eq.s32.totalorder %s111, 0
    %s114 = sadd.s32 %s113, 1
    %s115 = scalar_select %p112, %s113, %s114
    %p118 = pneg %p112
    %p119 = scmp.eq.s32.totalorder %s9, 3
    %p120 = por %p118, %p119
    %p121 = scmp.ne.s32.totalorder %s113, %s116
    %p122 = scmp.eq.s32.totalorder %s9, 0
    %p123 = por %p121, %p122
    %p124 = scmp.ne.s32.totalorder %s113, %s116
    %p125 = scmp.eq.s32.totalorder %s14, 3
    %p126 = por %p124, %p125
    %p127 = scmp.ne.s32.totalorder %s116, %s117
    %p128 = scmp.eq.s32.totalorder %s14, 0
    %p129 = por %p127, %p128
    %p130 = scmp.ne.s32.totalorder %s116, %s117
    %p131 = scmp.eq.s32.totalorder %s15, 3
    %p132 = por %p130, %p131
    %p134 = scmp.ne.s32.totalorder %s117, %s133
    %p135 = scmp.eq.s32.totalorder %s15, 0
    %p136 = por %p134, %p135
    %p137 = scmp.le.s32.totalorder 1, %s9
    %p138 = scmp.lt.s32.totalorder %s9, 5
    %p139 = pnand %p137, %p138
    %p140 = pneg %p139
    // Predicated region
    $region9: #{_fused_forward.1} parent=5 // pred_check
      _
    $region10: #{_fused_forward.1} parent=5 // pred_check_branch
      %142 = sbr.rel (%p139) target = $region12
    $region11: #{_fused_forward.1} parent=5 // pred_region
      %s143 = ssub.s32 %s9, 1
    $region12: #{_fused_forward.1} parent=5 // pred_fallthru
      _
    %p144 = scmp.lt.s32.totalorder %s9, 4
    // Predicated region
    $region13: #{_fused_forward.1} parent=5 // pred_check
      %p145 = pneg %p144
    $region14: #{_fused_forward.1} parent=5 // pred_check_branch
      %147 = sbr.rel (%p145) target = $region16
    $region15: #{_fused_forward.1} parent=5 // pred_region
      // Predicated region
      $region17: #{_fused_forward.1} parent=15 // pred_check
        %p148 = pneg %p43
      $region18: #{_fused_forward.1} parent=15 // pred_check_branch
        %150 = sbr.rel (%p148) target = $region20
      $region19: #{_fused_forward.1} parent=15 // pred_region
        %p151 = scmp.lt.s32.totalorder %s16, 1
        %s152 = scalar_select %p151, %s16, 1
        %p153 = scmp.lt.s32.totalorder %s17, 1
        %s154 = scalar_select %p153, %s17, 1
        %s155 = smul.addr %s154, 4
        %s156 = smul.addr %s152, 8
        %s157 = sadd.s32 %s155, %s156
        %s158 = smul.addr %s157, 4
        %s159 = scalar_lea.vmem %s0, %s158
      $region20: #{_fused_forward.1} parent=15 // pred_fallthru
        _
      // Predicated region
      $region21: #{_fused_forward.1} parent=15 // pred_check
        %p160 = pneg %p69
      $region22: #{_fused_forward.1} parent=15 // pred_check_branch
        %162 = sbr.rel (%p160) target = $region24
      $region23: #{_fused_forward.1} parent=15 // pred_region
        %p163 = scmp.lt.s32.totalorder %s16, 1
        %s164 = scalar_select %p163, %s16, 1
        %s165 = smul.addr %s164, 9
        %s166 = smul.addr %s165, 8
        %s167 = scalar_lea.vmem %s1, %s166
      $region24: #{_fused_forward.1} parent=15 // pred_fallthru
        _
      // Predicated region
      $region25: #{_fused_forward.1} parent=15 // pred_check
        %p168 = pneg %p95
      $region26: #{_fused_forward.1} parent=15 // pred_check_branch
        %170 = sbr.rel (%p168) target = $region28
      $region27: #{_fused_forward.1} parent=15 // pred_region
        %p171 = scmp.lt.s32.totalorder %s16, 1
        %s172 = scalar_select %p171, %s16, 1
        %s173 = smul.addr %s172, 8
        %s174 = scalar_lea.vmem %s2, %s173
      $region28: #{_fused_forward.1} parent=15 // pred_fallthru
        _
    $region16: #{_fused_forward.1} parent=5 // pred_fallthru
      _
    %p175 = scmp.le.s32.totalorder 1, %s9
    %p176 = scmp.lt.s32.totalorder %s9, 5
    %p177 = pnand %p175, %p176
    %p178 = pneg %p177
    // Predicated region
    $region29: #{_fused_forward.1} parent=5 // pred_check
      _
    $region30: #{_fused_forward.1} parent=5 // pred_check_branch
      %180 = sbr.rel (%p177) target = $region32
    $region31: #{_fused_forward.1} parent=5 // pred_region
      %s181 = ssub.s32 %s9, 1
      %p182 = scmp.lt.s32.totalorder %s18, 1
      %s183 = scalar_select %p182, %s18, 1
      %p184 = scmp.lt.s32.totalorder %s19, 1
      %s185 = scalar_select %p184, %s19, 1
      %s186 = smul.addr %s185, 4
      %s187 = smul.addr %s183, 8
      %s188 = sadd.s32 %s186, %s187
      %s189 = smul.addr %s188, 4
      %s190 = scalar_lea.vmem %s0, %s189
      %p191 = pneg %p49
      %p192 = pneg %p46
      %p193 = scmp.lt.s32.totalorder %s18, 1
      %s194 = scalar_select %p193, %s18, 1
      %s195 = smul.addr %s194, 9
      %s196 = smul.addr %s195, 8
      %s197 = scalar_lea.vmem %s1, %s196
      %p198 = pneg %p75
      %p199 = pneg %p72
      %p200 = scmp.lt.s32.totalorder %s18, 1
      %s201 = scalar_select %p200, %s18, 1
      %s202 = smul.addr %s201, 8
      %s203 = scalar_lea.vmem %s2, %s202
      %p204 = pneg %p101
      %p205 = pneg %p98
      %p206 = pneg %p129
      %p207 = pneg %p126
      %p208 = scmp.lt.s32.totalorder %s18, 1
      %s209 = scalar_select %p208, %s18, 1
      %p210 = scmp.lt.s32.totalorder %s19, 1
      %s211 = scalar_select %p210, %s19, 1
      %s212 = smul.addr %s211, 3
      %s213 = smul.addr %s209, 6
      %s214 = sadd.s32 %s212, %s213
      %s215 = smul.addr %s214, 8
      %s216 = scalar_lea.vmem %s3, %s215
      %p217 = scmp.lt.s32.totalorder %s18, 1
      %s218 = scalar_select %p217, %s18, 1
      %p219 = scmp.lt.s32.totalorder %s19, 1
      %s220 = scalar_select %p219, %s19, 1
      %s221 = smul.addr %s220, 4
      %s222 = smul.addr %s218, 8
      %s223 = sadd.s32 %s221, %s222
      %s224 = smul.addr %s223, 4
      %s225 = scalar_lea.vmem %s0, %s224
      %p226 = scmp.lt.s32.totalorder %s18, 1
      %s227 = scalar_select %p226, %s18, 1
      %s228 = smul.addr %s227, 9
      %s229 = smul.addr %s228, 8
      %s230 = scalar_lea.vmem %s1, %s229
      %p231 = scmp.lt.s32.totalorder %s18, 1
      %s232 = scalar_select %p231, %s18, 1
      %s233 = smul.addr %s232, 8
      %s234 = scalar_lea.vmem %s2, %s233
      %p235 = scmp.lt.s32.totalorder %s18, 1
      %s236 = scalar_select %p235, %s18, 1
      %p237 = scmp.lt.s32.totalorder %s19, 1
      %s238 = scalar_select %p237, %s19, 1
      %s239 = smul.addr %s238, 3
      %s240 = smul.addr %s236, 6
      %s241 = sadd.s32 %s239, %s240
      %s242 = smul.addr %s241, 8
      %s243 = scalar_lea.vmem %s3, %s242
      %v244 = vld [vmem:[%s225] sm:$0xff]
      %v245 = vld [vmem:[%s225 + $0x8] sm:$0xf]
      %v246 = vld [vmem:[%s230] sm:$0xff]
      %v247 = vld [vmem:[%s225] sm:$0xff]
      %v248 = vld [vmem:[%s225 + $0x8] sm:$0xff]
      %s249 = scalar_lea.vmem %s230, 8
      %v250 = vld [vmem:[%s249] sm:$0xff]
      %v253 = vcombine.high %v247, %v247
      %v254 = vcombine.high %v248, %v248
      %255 = vrot.lane.b32.xlu0 %v247, 127
      %v256 = vpop.permute.xlu0 %255
      %257 = vrot.lane.b32.xlu0 %v253, 127
      %v258 = vpop.permute.xlu0 %257
      %259 = vrot.lane.b32.xlu0 %v248, 127
      %v260 = vpop.permute.xlu0 %259
      %261 = vrot.lane.b32.xlu0 %v254, 127
      %v262 = vpop.permute.xlu0 %261
      %vm263 = vcmask 1039360
      %v264 = vsel %vm263, %v256, %v258
      %v265 = vsel %vm263, %v258, %v260
      %v266 = vsel %vm263, %v260, %v262
      %vm267 = vcmask 31744
      %v269 = vsel %vm267, %v250, 0
      %vm271 = vcmask 1043456
      %v272 = vsel %vm271, %v264, 0
      %v274 = vsel %vm271, %v265, 0
      %v276 = vsel %vm271, %v266, 0
      %278 = vmatprep.subr.mxu0 %v274
      %279 = vmatpush1.msra.mxu0 %v272
      %280 = vmatprep.subr.mxu0 0.0
      %281 = vmatpush1.msra.mxu0 0.0
      %282 = vmatprep.subr.mxu0 0.0
      %283 = vmatpush1.msra.mxu0 0.0
      %284 = vmatprep.subr.mxu0 0.0
      %285 = vmatpush1.msra.mxu0 0.0
      %286 = vmatprep.subr.mxu0 0.0
      %287 = vmatpush1.msra.mxu0 0.0
      %288 = vmatprep.subr.mxu0 0.0
      %289 = vmatpush1.msra.mxu0 0.0
      %290 = vmatprep.subr.mxu0 0.0
      %291 = vmatpush1.msra.mxu0 0.0
      %292 = vmatprep.subr.mxu0 0.0
      %293 = vmatpush1.msra.mxu0 0.0
      %294 = vmatprep.subr.mxu0 0.0
      %295 = vmatpush1.msra.mxu0 0.0
      %296 = vmatprep.subr.mxu0 0.0
      %297 = vmatpush1.msra.mxu0 0.0
      %298 = vmatprep.subr.mxu0 0.0
      %299 = vmatpush1.msra.mxu0 0.0
      %300 = vmatprep.subr.mxu0 0.0
      %301 = vmatpush1.msra.mxu0 0.0
      %302 = vmatprep.subr.mxu0 0.0
      %303 = vmatpush1.msra.mxu0 0.0
      %304 = vmatprep.subr.mxu0 0.0
      %305 = vmatpush1.msra.mxu0 0.0
      %306 = vmatprep.subr.mxu0 0.0
      %307 = vmatpush1.msra.mxu0 0.0
      %308 = vmatprep.subr.mxu0 0.0
      %309 = vmatpush1.msra.mxu0 0.0
      %310 = vmatprep.subr.mxu0 0.0
      %311 = vmatpush1.msra.mxu0 0.0
      %312 = vmatprep.subr.mxu0 0.0
      %313 = vmatpush1.msra.mxu0 0.0
      %314 = vmatprep.subr.mxu0 0.0
      %315 = vmatpush1.msra.mxu0 0.0
      %316 = vmatprep.subr.mxu0 0.0
      %317 = vmatpush1.msra.mxu0 0.0
      %318 = vmatprep.subr.mxu0 0.0
      %319 = vmatpush1.msra.mxu0 0.0
      %320 = vmatprep.subr.mxu0 0.0
      %321 = vmatpush1.msra.mxu0 0.0
      %322 = vmatprep.subr.mxu0 0.0
      %323 = vmatpush1.msra.mxu0 0.0
      %324 = vmatprep.subr.mxu0 0.0
      %325 = vmatpush1.msra.mxu0 0.0
      %326 = vmatprep.subr.mxu0 0.0
      %327 = vmatpush1.msra.mxu0 0.0
      %328 = vmatprep.subr.mxu0 0.0
      %329 = vmatpush1.msra.mxu0 0.0
      %330 = vmatprep.subr.mxu0 0.0
      %331 = vmatpush1.msra.mxu0 0.0
      %332 = vmatprep.subr.mxu0 0.0
      %333 = vmatpush1.msra.mxu0 0.0
      %334 = vmatprep.subr.mxu0 0.0
      %335 = vmatpush1.msra.mxu0 0.0
      %336 = vmatprep.subr.mxu0 0.0
      %337 = vmatpush1.msra.mxu0 0.0
      %338 = vmatprep.subr.mxu0 0.0
      %339 = vmatpush1.msra.mxu0 0.0
      %340 = vmatprep.subr.mxu0 0.0
      %341 = vmatpush1.msra.mxu0 0.0
      %342 = vmatprep.mubr.f32.mxu0 0.0
      %343 = vmatmul.mubr.f32.gmra.mrb[0].mxu0 %v269
      %v344 = vpop.f32.mrb[0].mxu0
      %v345 = vadd.f32 0.0, %v344
      %v346 = vpop.f32.mrb[0].mxu0
      %v347 = vadd.f32 0.0, %v346
      %348 = vdwg.mxu0
      %349 = vmatprep.subr.mxu0 0.0
      %350 = vmatpush1.msra.mxu0 %v276
      %351 = vmatprep.subr.mxu0 0.0
      %352 = vmatpush1.msra.mxu0 0.0
      %353 = vmatprep.subr.mxu0 0.0
      %354 = vmatpush1.msra.mxu0 0.0
      %355 = vmatprep.subr.mxu0 0.0
      %356 = vmatpush1.msra.mxu0 0.0
      %357 = vmatprep.subr.mxu0 0.0
      %358 = vmatpush1.msra.mxu0 0.0
      %359 = vmatprep.subr.mxu0 0.0
      %360 = vmatpush1.msra.mxu0 0.0
      %361 = vmatprep.subr.mxu0 0.0
      %362 = vmatpush1.msra.mxu0 0.0
      %363 = vmatprep.subr.mxu0 0.0
      %364 = vmatpush1.msra.mxu0 0.0
      %365 = vmatprep.subr.mxu0 0.0
      %366 = vmatpush1.msra.mxu0 0.0
      %367 = vmatprep.subr.mxu0 0.0
      %368 = vmatpush1.msra.mxu0 0.0
      %369 = vmatprep.subr.mxu0 0.0
      %370 = vmatpush1.msra.mxu0 0.0
      %371 = vmatprep.subr.mxu0 0.0
      %372 = vmatpush1.msra.mxu0 0.0
      %373 = vmatprep.subr.mxu0 0.0
      %374 = vmatpush1.msra.mxu0 0.0
      %375 = vmatprep.subr.mxu0 0.0
      %376 = vmatpush1.msra.mxu0 0.0
      %377 = vmatprep.subr.mxu0 0.0
      %378 = vmatpush1.msra.mxu0 0.0
      %379 = vmatprep.subr.mxu0 0.0
      %380 = vmatpush1.msra.mxu0 0.0
      %381 = vmatprep.subr.mxu0 0.0
      %382 = vmatpush1.msra.mxu0 0.0
      %383 = vmatprep.subr.mxu0 0.0
      %384 = vmatpush1.msra.mxu0 0.0
      %385 = vmatprep.subr.mxu0 0.0
      %386 = vmatpush1.msra.mxu0 0.0
      %387 = vmatprep.subr.mxu0 0.0
      %388 = vmatpush1.msra.mxu0 0.0
      %389 = vmatprep.subr.mxu0 0.0
      %390 = vmatpush1.msra.mxu0 0.0
      %391 = vmatprep.subr.mxu0 0.0
      %392 = vmatpush1.msra.mxu0 0.0
      %393 = vmatprep.subr.mxu0 0.0
      %394 = vmatpush1.msra.mxu0 0.0
      %395 = vmatprep.subr.mxu0 0.0
      %396 = vmatpush1.msra.mxu0 0.0
      %397 = vmatprep.subr.mxu0 0.0
      %398 = vmatpush1.msra.mxu0 0.0
      %399 = vmatprep.subr.mxu0 0.0
      %400 = vmatpush1.msra.mxu0 0.0
      %401 = vmatprep.subr.mxu0 0.0
      %402 = vmatpush1.msra.mxu0 0.0
      %403 = vmatprep.subr.mxu0 0.0
      %404 = vmatpush1.msra.mxu0 0.0
      %405 = vmatprep.subr.mxu0 0.0
      %406 = vmatpush1.msra.mxu0 0.0
      %407 = vmatprep.subr.mxu0 0.0
      %408 = vmatpush1.msra.mxu0 0.0
      %409 = vmatprep.subr.mxu0 0.0
      %410 = vmatpush1.msra.mxu0 0.0
      %411 = vmatprep.subr.mxu0 0.0
      %412 = vmatpush1.msra.mxu0 0.0
      %413 = vmatprep.mubr.f32.mxu0 0.0
      %414 = vmatmul.mubr.f32.gmra.mrb[0].mxu0 %v269
      %v415 = vpop.f32.mrb[0].mxu0
      %v416 = vadd.f32 0.0, %v415
      %v417 = vpop.f32.mrb[0].mxu0
      %418 = vdwg.mxu0
      %v421 = vcombine.high %v244, %v244
      %v423 = vsel %vm267, %v246, 0
      %v425 = vsel %vm271, %v244, 0
      %v427 = vsel %vm271, %v421, 0
      %v429 = vsel %vm271, %v245, 0
      %431 = vmatprep.subr.mxu0 %v427
      %432 = vmatpush1.msra.mxu0 %v425
      %433 = vmatprep.subr.mxu0 0.0
      %434 = vmatpush1.msra.mxu0 0.0
      %435 = vmatprep.subr.mxu0 0.0
      %436 = vmatpush1.msra.mxu0 0.0
      %437 = vmatprep.subr.mxu0 0.0
      %438 = vmatpush1.msra.mxu0 0.0
      %439 = vmatprep.subr.mxu0 0.0
      %440 = vmatpush1.msra.mxu0 0.0
      %441 = vmatprep.subr.mxu0 0.0
      %442 = vmatpush1.msra.mxu0 0.0
      %443 = vmatprep.subr.mxu0 0.0
      %444 = vmatpush1.msra.mxu0 0.0
      %445 = vmatprep.subr.mxu0 0.0
      %446 = vmatpush1.msra.mxu0 0.0
      %447 = vmatprep.subr.mxu0 0.0
      %448 = vmatpush1.msra.mxu0 0.0
      %449 = vmatprep.subr.mxu0 0.0
      %450 = vmatpush1.msra.mxu0 0.0
      %451 = vmatprep.subr.mxu0 0.0
      %452 = vmatpush1.msra.mxu0 0.0
      %453 = vmatprep.subr.mxu0 0.0
      %454 = vmatpush1.msra.mxu0 0.0
      %455 = vmatprep.subr.mxu0 0.0
      %456 = vmatpush1.msra.mxu0 0.0
      %457 = vmatprep.subr.mxu0 0.0
      %458 = vmatpush1.msra.mxu0 0.0
      %459 = vmatprep.subr.mxu0 0.0
      %460 = vmatpush1.msra.mxu0 0.0
      %461 = vmatprep.subr.mxu0 0.0
      %462 = vmatpush1.msra.mxu0 0.0
      %463 = vmatprep.subr.mxu0 0.0
      %464 = vmatpush1.msra.mxu0 0.0
      %465 = vmatprep.subr.mxu0 0.0
      %466 = vmatpush1.msra.mxu0 0.0
      %467 = vmatprep.subr.mxu0 0.0
      %468 = vmatpush1.msra.mxu0 0.0
      %469 = vmatprep.subr.mxu0 0.0
      %470 = vmatpush1.msra.mxu0 0.0
      %471 = vmatprep.subr.mxu0 0.0
      %472 = vmatpush1.msra.mxu0 0.0
      %473 = vmatprep.subr.mxu0 0.0
      %474 = vmatpush1.msra.mxu0 0.0
      %475 = vmatprep.subr.mxu0 0.0
      %476 = vmatpush1.msra.mxu0 0.0
      %477 = vmatprep.subr.mxu0 0.0
      %478 = vmatpush1.msra.mxu0 0.0
      %479 = vmatprep.subr.mxu0 0.0
      %480 = vmatpush1.msra.mxu0 0.0
      %481 = vmatprep.subr.mxu0 0.0
      %482 = vmatpush1.msra.mxu0 0.0
      %483 = vmatprep.subr.mxu0 0.0
      %484 = vmatpush1.msra.mxu0 0.0
      %485 = vmatprep.subr.mxu0 0.0
      %486 = vmatpush1.msra.mxu0 0.0
      %487 = vmatprep.subr.mxu0 0.0
      %488 = vmatpush1.msra.mxu0 0.0
      %489 = vmatprep.subr.mxu0 0.0
      %490 = vmatpush1.msra.mxu0 0.0
      %491 = vmatprep.subr.mxu0 0.0
      %492 = vmatpush1.msra.mxu0 0.0
      %493 = vmatprep.subr.mxu0 0.0
      %494 = vmatpush1.msra.mxu0 0.0
      %495 = vmatprep.mubr.f32.mxu0 0.0
      %496 = vmatmul.mubr.f32.gmra.mrb[0].mxu0 %v423
      %v497 = vpop.f32.mrb[0].mxu0
      %v498 = vadd.f32 %v345, %v497
      %v499 = vpop.f32.mrb[0].mxu0
      %v500 = vadd.f32 %v347, %v499
      %501 = vdwg.mxu0
      %502 = vmatprep.subr.mxu0 0.0
      %503 = vmatpush1.msra.mxu0 %v429
      %504 = vmatprep.subr.mxu0 0.0
      %505 = vmatpush1.msra.mxu0 0.0
      %506 = vmatprep.subr.mxu0 0.0
      %507 = vmatpush1.msra.mxu0 0.0
      %508 = vmatprep.subr.mxu0 0.0
      %509 = vmatpush1.msra.mxu0 0.0
      %510 = vmatprep.subr.mxu0 0.0
      %511 = vmatpush1.msra.mxu0 0.0
      %512 = vmatprep.subr.mxu0 0.0
      %513 = vmatpush1.msra.mxu0 0.0
      %514 = vmatprep.subr.mxu0 0.0
      %515 = vmatpush1.msra.mxu0 0.0
      %516 = vmatprep.subr.mxu0 0.0
      %517 = vmatpush1.msra.mxu0 0.0
      %518 = vmatprep.subr.mxu0 0.0
      %519 = vmatpush1.msra.mxu0 0.0
      %520 = vmatprep.subr.mxu0 0.0
      %521 = vmatpush1.msra.mxu0 0.0
      %522 = vmatprep.subr.mxu0 0.0
      %523 = vmatpush1.msra.mxu0 0.0
      %524 = vmatprep.subr.mxu0 0.0
      %525 = vmatpush1.msra.mxu0 0.0
      %526 = vmatprep.subr.mxu0 0.0
      %527 = vmatpush1.msra.mxu0 0.0
      %528 = vmatprep.subr.mxu0 0.0
      %529 = vmatpush1.msra.mxu0 0.0
      %530 = vmatprep.subr.mxu0 0.0
      %531 = vmatpush1.msra.mxu0 0.0
      %532 = vmatprep.subr.mxu0 0.0
      %533 = vmatpush1.msra.mxu0 0.0
      %534 = vmatprep.subr.mxu0 0.0
      %535 = vmatpush1.msra.mxu0 0.0
      %536 = vmatprep.subr.mxu0 0.0
      %537 = vmatpush1.msra.mxu0 0.0
      %538 = vmatprep.subr.mxu0 0.0
      %539 = vmatpush1.msra.mxu0 0.0
      %540 = vmatprep.subr.mxu0 0.0
      %541 = vmatpush1.msra.mxu0 0.0
      %542 = vmatprep.subr.mxu0 0.0
      %543 = vmatpush1.msra.mxu0 0.0
      %544 = vmatprep.subr.mxu0 0.0
      %545 = vmatpush1.msra.mxu0 0.0
      %546 = vmatprep.subr.mxu0 0.0
      %547 = vmatpush1.msra.mxu0 0.0
      %548 = vmatprep.subr.mxu0 0.0
      %549 = vmatpush1.msra.mxu0 0.0
      %550 = vmatprep.subr.mxu0 0.0
      %551 = vmatpush1.msra.mxu0 0.0
      %552 = vmatprep.subr.mxu0 0.0
      %553 = vmatpush1.msra.mxu0 0.0
      %554 = vmatprep.subr.mxu0 0.0
      %555 = vmatpush1.msra.mxu0 0.0
      %556 = vmatprep.subr.mxu0 0.0
      %557 = vmatpush1.msra.mxu0 0.0
      %558 = vmatprep.subr.mxu0 0.0
      %559 = vmatpush1.msra.mxu0 0.0
      %560 = vmatprep.subr.mxu0 0.0
      %561 = vmatpush1.msra.mxu0 0.0
      %562 = vmatprep.subr.mxu0 0.0
      %563 = vmatpush1.msra.mxu0 0.0
      %564 = vmatprep.subr.mxu0 0.0
      %565 = vmatpush1.msra.mxu0 0.0
      %566 = vmatprep.mubr.f32.mxu0 0.0
      %567 = vmatmul.mubr.f32.gmra.mrb[0].mxu0 %v423
      %v568 = vpop.f32.mrb[0].mxu0
      %v569 = vadd.f32 %v416, %v568
      %v570 = vpop.f32.mrb[0].mxu0
      %571 = vdwg.mxu0
      %v572 = vld [vmem:[%s225] sm:$0xff]
      %v573 = vld [vmem:[%s225 + $0x8] sm:$0xff]
      %s574 = scalar_lea.vmem %s230, 16
      %v575 = vld [vmem:[%s574] sm:$0xff]
      %v578 = vcombine.high %v572, %v572
      %v579 = vcombine.high %v573, %v573
      %580 = vrot.lane.b32.xlu0 %v572, 126
      %v581 = vpop.permute.xlu0 %580
      %582 = vrot.lane.b32.xlu0 %v578, 126
      %v583 = vpop.permute.xlu0 %582
      %584 = vrot.lane.b32.xlu0 %v573, 126
      %v585 = vpop.permute.xlu0 %584
      %586 = vrot.lane.b32.xlu0 %v579, 126
      %v587 = vpop.permute.xlu0 %586
      %vm588 = vcmask 1031168
      %v589 = vsel %vm588, %v581, %v583
      %v590 = vsel %vm588, %v583, %v585
      %v591 = vsel %vm588, %v585, %v587
      %v593 = vsel %vm267, %v575, 0
      %v595 = vsel %vm271, %v589, 0
      %v597 = vsel %vm271, %v590, 0
      %v599 = vsel %vm271, %v591, 0
      %601 = vmatprep.subr.mxu0 %v597
      %602 = vmatpush1.msra.mxu0 %v595
      %603 = vmatprep.subr.mxu0 0.0
      %604 = vmatpush1.msra.mxu0 0.0
      %605 = vmatprep.subr.mxu0 0.0
      %606 = vmatpush1.msra.mxu0 0.0
      %607 = vmatprep.subr.mxu0 0.0
      %608 = vmatpush1.msra.mxu0 0.0
      %609 = vmatprep.subr.mxu0 0.0
      %610 = vmatpush1.msra.mxu0 0.0
      %611 = vmatprep.subr.mxu0 0.0
      %612 = vmatpush1.msra.mxu0 0.0
      %613 = vmatprep.subr.mxu0 0.0
      %614 = vmatpush1.msra.mxu0 0.0
      %615 = vmatprep.subr.mxu0 0.0
      %616 = vmatpush1.msra.mxu0 0.0
      %617 = vmatprep.subr.mxu0 0.0
      %618 = vmatpush1.msra.mxu0 0.0
      %619 = vmatprep.subr.mxu0 0.0
      %620 = vmatpush1.msra.mxu0 0.0
      %621 = vmatprep.subr.mxu0 0.0
      %622 = vmatpush1.msra.mxu0 0.0
      %623 = vmatprep.subr.mxu0 0.0
      %624 = vmatpush1.msra.mxu0 0.0
      %625 = vmatprep.subr.mxu0 0.0
      %626 = vmatpush1.msra.mxu0 0.0
      %627 = vmatprep.subr.mxu0 0.0
      %628 = vmatpush1.msra.mxu0 0.0
      %629 = vmatprep.subr.mxu0 0.0
      %630 = vmatpush1.msra.mxu0 0.0
      %631 = vmatprep.subr.mxu0 0.0
      %632 = vmatpush1.msra.mxu0 0.0
      %633 = vmatprep.subr.mxu0 0.0
      %634 = vmatpush1.msra.mxu0 0.0
      %635 = vmatprep.subr.mxu0 0.0
      %636 = vmatpush1.msra.mxu0 0.0
      %637 = vmatprep.subr.mxu0 0.0
      %638 = vmatpush1.msra.mxu0 0.0
      %639 = vmatprep.subr.mxu0 0.0
      %640 = vmatpush1.msra.mxu0 0.0
      %641 = vmatprep.subr.mxu0 0.0
      %642 = vmatpush1.msra.mxu0 0.0
      %643 = vmatprep.subr.mxu0 0.0
      %644 = vmatpush1.msra.mxu0 0.0
      %645 = vmatprep.subr.mxu0 0.0
      %646 = vmatpush1.msra.mxu0 0.0
      %647 = vmatprep.subr.mxu0 0.0
      %648 = vmatpush1.msra.mxu0 0.0
      %649 = vmatprep.subr.mxu0 0.0
      %650 = vmatpush1.msra.mxu0 0.0
      %651 = vmatprep.subr.mxu0 0.0
      %652 = vmatpush1.msra.mxu0 0.0
      %653 = vmatprep.subr.mxu0 0.0
      %654 = vmatpush1.msra.mxu0 0.0
      %655 = vmatprep.subr.mxu0 0.0
      %656 = vmatpush1.msra.mxu0 0.0
      %657 = vmatprep.subr.mxu0 0.0
      %658 = vmatpush1.msra.mxu0 0.0
      %659 = vmatprep.subr.mxu0 0.0
      %660 = vmatpush1.msra.mxu0 0.0
      %661 = vmatprep.subr.mxu0 0.0
      %662 = vmatpush1.msra.mxu0 0.0
      %663 = vmatprep.subr.mxu0 0.0
      %664 = vmatpush1.msra.mxu0 0.0
      %665 = vmatprep.mubr.f32.mxu0 0.0
      %666 = vmatmul.mubr.f32.gmra.mrb[0].mxu0 %v593
      %v667 = vpop.f32.mrb[0].mxu0
      %v668 = vadd.f32 0.0, %v667
      %v669 = vpop.f32.mrb[0].mxu0
      %v670 = vadd.f32 0.0, %v669
      %671 = vdwg.mxu0
      %672 = vmatprep.subr.mxu0 0.0
      %673 = vmatpush1.msra.mxu0 %v599
      %674 = vmatprep.subr.mxu0 0.0
      %675 = vmatpush1.msra.mxu0 0.0
      %676 = vmatprep.subr.mxu0 0.0
      %677 = vmatpush1.msra.mxu0 0.0
      %678 = vmatprep.subr.mxu0 0.0
      %679 = vmatpush1.msra.mxu0 0.0
      %680 = vmatprep.subr.mxu0 0.0
      %681 = vmatpush1.msra.mxu0 0.0
      %682 = vmatprep.subr.mxu0 0.0
      %683 = vmatpush1.msra.mxu0 0.0
      %684 = vmatprep.subr.mxu0 0.0
      %685 = vmatpush1.msra.mxu0 0.0
      %686 = vmatprep.subr.mxu0 0.0
      %687 = vmatpush1.msra.mxu0 0.0
      %688 = vmatprep.subr.mxu0 0.0
      %689 = vmatpush1.msra.mxu0 0.0
      %690 = vmatprep.subr.mxu0 0.0
      %691 = vmatpush1.msra.mxu0 0.0
      %692 = vmatprep.subr.mxu0 0.0
      %693 = vmatpush1.msra.mxu0 0.0
      %694 = vmatprep.subr.mxu0 0.0
      %695 = vmatpush1.msra.mxu0 0.0
      %696 = vmatprep.subr.mxu0 0.0
      %697 = vmatpush1.msra.mxu0 0.0
      %698 = vmatprep.subr.mxu0 0.0
      %699 = vmatpush1.msra.mxu0 0.0
      %700 = vmatprep.subr.mxu0 0.0
      %701 = vmatpush1.msra.mxu0 0.0
      %702 = vmatprep.subr.mxu0 0.0
      %703 = vmatpush1.msra.mxu0 0.0
      %704 = vmatprep.subr.mxu0 0.0
      %705 = vmatpush1.msra.mxu0 0.0
      %706 = vmatprep.subr.mxu0 0.0
      %707 = vmatpush1.msra.mxu0 0.0
      %708 = vmatprep.subr.mxu0 0.0
      %709 = vmatpush1.msra.mxu0 0.0
      %710 = vmatprep.subr.mxu0 0.0
      %711 = vmatpush1.msra.mxu0 0.0
      %712 = vmatprep.subr.mxu0 0.0
      %713 = vmatpush1.msra.mxu0 0.0
      %714 = vmatprep.subr.mxu0 0.0
      %715 = vmatpush1.msra.mxu0 0.0
      %716 = vmatprep.subr.mxu0 0.0
      %717 = vmatpush1.msra.mxu0 0.0
      %718 = vmatprep.subr.mxu0 0.0
      %719 = vmatpush1.msra.mxu0 0.0
      %720 = vmatprep.subr.mxu0 0.0
      %721 = vmatpush1.msra.mxu0 0.0
      %722 = vmatprep.subr.mxu0 0.0
      %723 = vmatpush1.msra.mxu0 0.0
      %724 = vmatprep.subr.mxu0 0.0
      %725 = vmatpush1.msra.mxu0 0.0
      %726 = vmatprep.subr.mxu0 0.0
      %727 = vmatpush1.msra.mxu0 0.0
      %728 = vmatprep.subr.mxu0 0.0
      %729 = vmatpush1.msra.mxu0 0.0
      %730 = vmatprep.subr.mxu0 0.0
      %731 = vmatpush1.msra.mxu0 0.0
      %732 = vmatprep.subr.mxu0 0.0
      %733 = vmatpush1.msra.mxu0 0.0
      %734 = vmatprep.subr.mxu0 0.0
      %735 = vmatpush1.msra.mxu0 0.0
      %736 = vmatprep.mubr.f32.mxu0 0.0
      %737 = vmatmul.mubr.f32.gmra.mrb[0].mxu0 %v593
      %v738 = vpop.f32.mrb[0].mxu0
      %v739 = vadd.f32 0.0, %v738
      %v740 = vpop.f32.mrb[0].mxu0
      %741 = vdwg.mxu0
      %v742 = vadd.f32 %v498, %v668
      %v743 = vadd.f32 %v500, %v670
      %v744 = vadd.f32 %v569, %v739
      %v745 = vld [vmem:[%s225] sm:$0xff]
      %v746 = vld [vmem:[%s225 + $0x8] sm:$0xff]
      %s747 = scalar_lea.vmem %s230, 24
      %v748 = vld [vmem:[%s747] sm:$0xff]
      %v751 = vcombine.high %v745, %v745
      %v752 = vcombine.high %v746, %v746
      %753 = vrot.lane.b32.xlu0 %v745, 110
      %v754 = vpop.permute.xlu0 %753
      %755 = vrot.lane.b32.xlu0 %v751, 110
      %v756 = vpop.permute.xlu0 %755
      %757 = vrot.lane.b32.xlu0 %v746, 110
      %v758 = vpop.permute.xlu0 %757
      %759 = vrot.lane.b32.xlu0 %v752, 110
      %v760 = vpop.permute.xlu0 %759
      %vm761 = vcmask 900096
      %v762 = vsel %vm761, %v754, %v756
      %v763 = vsel %vm761, %v756, %v758
      %v764 = vsel %vm761, %v758, %v760
      %v766 = vsel %vm267, %v748, 0
      %v768 = vsel %vm271, %v762, 0
      %v770 = vsel %vm271, %v763, 0
      %v772 = vsel %vm271, %v764, 0
      %774 = vmatprep.subr.mxu0 %v770
      %775 = vmatpush1.msra.mxu0 %v768
      %776 = vmatprep.subr.mxu0 0.0
      %777 = vmatpush1.msra.mxu0 0.0
      %778 = vmatprep.subr.mxu0 0.0
      %779 = vmatpush1.msra.mxu0 0.0
      %780 = vmatprep.subr.mxu0 0.0
      %781 = vmatpush1.msra.mxu0 0.0
      %782 = vmatprep.subr.mxu0 0.0
      %783 = vmatpush1.msra.mxu0 0.0
      %784 = vmatprep.subr.mxu0 0.0
      %785 = vmatpush1.msra.mxu0 0.0
      %786 = vmatprep.subr.mxu0 0.0
      %787 = vmatpush1.msra.mxu0 0.0
      %788 = vmatprep.subr.mxu0 0.0
      %789 = vmatpush1.msra.mxu0 0.0
      %790 = vmatprep.subr.mxu0 0.0
      %791 = vmatpush1.msra.mxu0 0.0
      %792 = vmatprep.subr.mxu0 0.0
      %793 = vmatpush1.msra.mxu0 0.0
      %794 = vmatprep.subr.mxu0 0.0
      %795 = vmatpush1.msra.mxu0 0.0
      %796 = vmatprep.subr.mxu0 0.0
      %797 = vmatpush1.msra.mxu0 0.0
      %798 = vmatprep.subr.mxu0 0.0
      %799 = vmatpush1.msra.mxu0 0.0
      %800 = vmatprep.subr.mxu0 0.0
      %801 = vmatpush1.msra.mxu0 0.0
      %802 = vmatprep.subr.mxu0 0.0
      %803 = vmatpush1.msra.mxu0 0.0
      %804 = vmatprep.subr.mxu0 0.0
      %805 = vmatpush1.msra.mxu0 0.0
      %806 = vmatprep.subr.mxu0 0.0
      %807 = vmatpush1.msra.mxu0 0.0
      %808 = vmatprep.subr.mxu0 0.0
      %809 = vmatpush1.msra.mxu0 0.0
      %810 = vmatprep.subr.mxu0 0.0
      %811 = vmatpush1.msra.mxu0 0.0
      %812 = vmatprep.subr.mxu0 0.0
      %813 = vmatpush1.msra.mxu0 0.0
      %814 = vmatprep.subr.mxu0 0.0
      %815 = vmatpush1.msra.mxu0 0.0
      %816 = vmatprep.subr.mxu0 0.0
      %817 = vmatpush1.msra.mxu0 0.0
      %818 = vmatprep.subr.mxu0 0.0
      %819 = vmatpush1.msra.mxu0 0.0
      %820 = vmatprep.subr.mxu0 0.0
      %821 = vmatpush1.msra.mxu0 0.0
      %822 = vmatprep.subr.mxu0 0.0
      %823 = vmatpush1.msra.mxu0 0.0
      %824 = vmatprep.subr.mxu0 0.0
      %825 = vmatpush1.msra.mxu0 0.0
      %826 = vmatprep.subr.mxu0 0.0
      %827 = vmatpush1.msra.mxu0 0.0
      %828 = vmatprep.subr.mxu0 0.0
      %829 = vmatpush1.msra.mxu0 0.0
      %830 = vmatprep.subr.mxu0 0.0
      %831 = vmatpush1.msra.mxu0 0.0
      %832 = vmatprep.subr.mxu0 0.0
      %833 = vmatpush1.msra.mxu0 0.0
      %834 = vmatprep.subr.mxu0 0.0
      %835 = vmatpush1.msra.mxu0 0.0
      %836 = vmatprep.subr.mxu0 0.0
      %837 = vmatpush1.msra.mxu0 0.0
      %838 = vmatprep.mubr.f32.mxu0 0.0
      %839 = vmatmul.mubr.f32.gmra.mrb[0].mxu0 %v766
      %v840 = vpop.f32.mrb[0].mxu0
      %v841 = vadd.f32 0.0, %v840
      %v842 = vpop.f32.mrb[0].mxu0
      %v843 = vadd.f32 0.0, %v842
      %844 = vdwg.mxu0
      %845 = vmatprep.subr.mxu0 0.0
      %846 = vmatpush1.msra.mxu0 %v772
      %847 = vmatprep.subr.mxu0 0.0
      %848 = vmatpush1.msra.mxu0 0.0
      %849 = vmatprep.subr.mxu0 0.0
      %850 = vmatpush1.msra.mxu0 0.0
      %851 = vmatprep.subr.mxu0 0.0
      %852 = vmatpush1.msra.mxu0 0.0
      %853 = vmatprep.subr.mxu0 0.0
      %854 = vmatpush1.msra.mxu0 0.0
      %855 = vmatprep.subr.mxu0 0.0
      %856 = vmatpush1.msra.mxu0 0.0
      %857 = vmatprep.subr.mxu0 0.0
      %858 = vmatpush1.msra.mxu0 0.0
      %859 = vmatprep.subr.mxu0 0.0
      %860 = vmatpush1.msra.mxu0 0.0
      %861 = vmatprep.subr.mxu0 0.0
      %862 = vmatpush1.msra.mxu0 0.0
      %863 = vmatprep.subr.mxu0 0.0
      %864 = vmatpush1.msra.mxu0 0.0
      %865 = vmatprep.subr.mxu0 0.0
      %866 = vmatpush1.msra.mxu0 0.0
      %867 = vmatprep.subr.mxu0 0.0
      %868 = vmatpush1.msra.mxu0 0.0
      %869 = vmatprep.subr.mxu0 0.0
      %870 = vmatpush1.msra.mxu0 0.0
      %871 = vmatprep.subr.mxu0 0.0
      %872 = vmatpush1.msra.mxu0 0.0
      %873 = vmatprep.subr.mxu0 0.0
      %874 = vmatpush1.msra.mxu0 0.0
      %875 = vmatprep.subr.mxu0 0.0
      %876 = vmatpush1.msra.mxu0 0.0
      %877 = vmatprep.subr.mxu0 0.0
      %878 = vmatpush1.msra.mxu0 0.0
      %879 = vmatprep.subr.mxu0 0.0
      %880 = vmatpush1.msra.mxu0 0.0
      %881 = vmatprep.subr.mxu0 0.0
      %882 = vmatpush1.msra.mxu0 0.0
      %883 = vmatprep.subr.mxu0 0.0
      %884 = vmatpush1.msra.mxu0 0.0
      %885 = vmatprep.subr.mxu0 0.0
      %886 = vmatpush1.msra.mxu0 0.0
      %887 = vmatprep.subr.mxu0 0.0
      %888 = vmatpush1.msra.mxu0 0.0
      %889 = vmatprep.subr.mxu0 0.0
      %890 = vmatpush1.msra.mxu0 0.0
      %891 = vmatprep.subr.mxu0 0.0
      %892 = vmatpush1.msra.mxu0 0.0
      %893 = vmatprep.subr.mxu0 0.0
      %894 = vmatpush1.msra.mxu0 0.0
      %895 = vmatprep.subr.mxu0 0.0
      %896 = vmatpush1.msra.mxu0 0.0
      %897 = vmatprep.subr.mxu0 0.0
      %898 = vmatpush1.msra.mxu0 0.0
      %899 = vmatprep.subr.mxu0 0.0
      %900 = vmatpush1.msra.mxu0 0.0
      %901 = vmatprep.subr.mxu0 0.0
      %902 = vmatpush1.msra.mxu0 0.0
      %903 = vmatprep.subr.mxu0 0.0
      %904 = vmatpush1.msra.mxu0 0.0
      %905 = vmatprep.subr.mxu0 0.0
      %906 = vmatpush1.msra.mxu0 0.0
      %907 = vmatprep.subr.mxu0 0.0
      %908 = vmatpush1.msra.mxu0 0.0
      %909 = vmatprep.mubr.f32.mxu0 0.0
      %910 = vmatmul.mubr.f32.gmra.mrb[0].mxu0 %v766
      %v911 = vpop.f32.mrb[0].mxu0
      %v912 = vadd.f32 0.0, %v911
      %v913 = vpop.f32.mrb[0].mxu0
      %914 = vdwg.mxu0
      %v915 = vadd.f32 %v742, %v841
      %v916 = vadd.f32 %v743, %v843
      %v917 = vadd.f32 %v744, %v912
      %v918 = vld [vmem:[%s225] sm:$0xff]
      %v919 = vld [vmem:[%s225 + $0x8] sm:$0xff]
      %s920 = scalar_lea.vmem %s230, 32
      %v921 = vld [vmem:[%s920] sm:$0xff]
      %v924 = vcombine.high %v918, %v918
      %v925 = vcombine.high %v919, %v919
      %926 = vrot.lane.b32.xlu0 %v918, 109
      %v927 = vpop.permute.xlu0 %926
      %928 = vrot.lane.b32.xlu0 %v924, 109
      %v929 = vpop.permute.xlu0 %928
      %930 = vrot.lane.b32.xlu0 %v919, 109
      %v931 = vpop.permute.xlu0 %930
      %932 = vrot.lane.b32.xlu0 %v925, 109
      %v933 = vpop.permute.xlu0 %932
      %vm934 = vcmask 891904
      %v935 = vsel %vm934, %v927, %v929
      %v936 = vsel %vm934, %v929, %v931
      %v937 = vsel %vm934, %v931, %v933
      %v939 = vsel %vm267, %v921, 0
      %v941 = vsel %vm271, %v935, 0
      %v943 = vsel %vm271, %v936, 0
      %v945 = vsel %vm271, %v937, 0
      %947 = vmatprep.subr.mxu0 %v943
      %948 = vmatpush1.msra.mxu0 %v941
      %949 = vmatprep.subr.mxu0 0.0
      %950 = vmatpush1.msra.mxu0 0.0
      %951 = vmatprep.subr.mxu0 0.0
      %952 = vmatpush1.msra.mxu0 0.0
      %953 = vmatprep.subr.mxu0 0.0
      %954 = vmatpush1.msra.mxu0 0.0
      %955 = vmatprep.subr.mxu0 0.0
      %956 = vmatpush1.msra.mxu0 0.0
      %957 = vmatprep.subr.mxu0 0.0
      %958 = vmatpush1.msra.mxu0 0.0
      %959 = vmatprep.subr.mxu0 0.0
      %960 = vmatpush1.msra.mxu0 0.0
      %961 = vmatprep.subr.mxu0 0.0
      %962 = vmatpush1.msra.mxu0 0.0
      %963 = vmatprep.subr.mxu0 0.0
      %964 = vmatpush1.msra.mxu0 0.0
      %965 = vmatprep.subr.mxu0 0.0
      %966 = vmatpush1.msra.mxu0 0.0
      %967 = vmatprep.subr.mxu0 0.0
      %968 = vmatpush1.msra.mxu0 0.0
      %969 = vmatprep.subr.mxu0 0.0
      %970 = vmatpush1.msra.mxu0 0.0
      %971 = vmatprep.subr.mxu0 0.0
      %972 = vmatpush1.msra.mxu0 0.0
      %973 = vmatprep.subr.mxu0 0.0
      %974 = vmatpush1.msra.mxu0 0.0
      %975 = vmatprep.subr.mxu0 0.0
      %976 = vmatpush1.msra.mxu0 0.0
      %977 = vmatprep.subr.mxu0 0.0
      %978 = vmatpush1.msra.mxu0 0.0
      %979 = vmatprep.subr.mxu0 0.0
      %980 = vmatpush1.msra.mxu0 0.0
      %981 = vmatprep.subr.mxu0 0.0
      %982 = vmatpush1.msra.mxu0 0.0
      %983 = vmatprep.subr.mxu0 0.0
      %984 = vmatpush1.msra.mxu0 0.0
      %985 = vmatprep.subr.mxu0 0.0
      %986 = vmatpush1.msra.mxu0 0.0
      %987 = vmatprep.subr.mxu0 0.0
      %988 = vmatpush1.msra.mxu0 0.0
      %989 = vmatprep.subr.mxu0 0.0
      %990 = vmatpush1.msra.mxu0 0.0
      %991 = vmatprep.subr.mxu0 0.0
      %992 = vmatpush1.msra.mxu0 0.0
      %993 = vmatprep.subr.mxu0 0.0
      %994 = vmatpush1.msra.mxu0 0.0
      %995 = vmatprep.subr.mxu0 0.0
      %996 = vmatpush1.msra.mxu0 0.0
      %997 = vmatprep.subr.mxu0 0.0
      %998 = vmatpush1.msra.mxu0 0.0
      %999 = vmatprep.subr.mxu0 0.0
      %1000 = vmatpush1.msra.mxu0 0.0
      %1001 = vmatprep.subr.mxu0 0.0
      %1002 = vmatpush1.msra.mxu0 0.0
      %1003 = vmatprep.subr.mxu0 0.0
      %1004 = vmatpush1.msra.mxu0 0.0
      %1005 = vmatprep.subr.mxu0 0.0
      %1006 = vmatpush1.msra.mxu0 0.0
      %1007 = vmatprep.subr.mxu0 0.0
      %1008 = vmatpush1.msra.mxu0 0.0
      %1009 = vmatprep.subr.mxu0 0.0
      %1010 = vmatpush1.msra.mxu0 0.0
      %1011 = vmatprep.mubr.f32.mxu0 0.0
      %1012 = vmatmul.mubr.f32.gmra.mrb[0].mxu0 %v939
      %v1013 = vpop.f32.mrb[0].mxu0
      %v1014 = vadd.f32 0.0, %v1013
      %v1015 = vpop.f32.mrb[0].mxu0
      %v1016 = vadd.f32 0.0, %v1015
      %1017 = vdwg.mxu0
      %1018 = vmatprep.subr.mxu0 0.0
      %1019 = vmatpush1.msra.mxu0 %v945
      %1020 = vmatprep.subr.mxu0 0.0
      %1021 = vmatpush1.msra.mxu0 0.0
      %1022 = vmatprep.subr.mxu0 0.0
      %1023 = vmatpush1.msra.mxu0 0.0
      %1024 = vmatprep.subr.mxu0 0.0
      %1025 = vmatpush1.msra.mxu0 0.0
      %1026 = vmatprep.subr.mxu0 0.0
      %1027 = vmatpush1.msra.mxu0 0.0
      %1028 = vmatprep.subr.mxu0 0.0
      %1029 = vmatpush1.msra.mxu0 0.0
      %1030 = vmatprep.subr.mxu0 0.0
      %1031 = vmatpush1.msra.mxu0 0.0
      %1032 = vmatprep.subr.mxu0 0.0
      %1033 = vmatpush1.msra.mxu0 0.0
      %1034 = vmatprep.subr.mxu0 0.0
      %1035 = vmatpush1.msra.mxu0 0.0
      %1036 = vmatprep.subr.mxu0 0.0
      %1037 = vmatpush1.msra.mxu0 0.0
      %1038 = vmatprep.subr.mxu0 0.0
      %1039 = vmatpush1.msra.mxu0 0.0
      %1040 = vmatprep.subr.mxu0 0.0
      %1041 = vmatpush1.msra.mxu0 0.0
      %1042 = vmatprep.subr.mxu0 0.0
      %1043 = vmatpush1.msra.mxu0 0.0
      %1044 = vmatprep.subr.mxu0 0.0
      %1045 = vmatpush1.msra.mxu0 0.0
      %1046 = vmatprep.subr.mxu0 0.0
      %1047 = vmatpush1.msra.mxu0 0.0
      %1048 = vmatprep.subr.mxu0 0.0
      %1049 = vmatpush1.msra.mxu0 0.0
      %1050 = vmatprep.subr.mxu0 0.0
      %1051 = vmatpush1.msra.mxu0 0.0
      %1052 = vmatprep.subr.mxu0 0.0
      %1053 = vmatpush1.msra.mxu0 0.0
      %1054 = vmatprep.subr.mxu0 0.0
      %1055 = vmatpush1.msra.mxu0 0.0
      %1056 = vmatprep.subr.mxu0 0.0
      %1057 = vmatpush1.msra.mxu0 0.0
      %1058 = vmatprep.subr.mxu0 0.0
      %1059 = vmatpush1.msra.mxu0 0.0
      %1060 = vmatprep.subr.mxu0 0.0
      %1061 = vmatpush1.msra.mxu0 0.0
      %1062 = vmatprep.subr.mxu0 0.0
      %1063 = vmatpush1.msra.mxu0 0.0
      %1064 = vmatprep.subr.mxu0 0.0
      %1065 = vmatpush1.msra.mxu0 0.0
      %1066 = vmatprep.subr.mxu0 0.0
      %1067 = vmatpush1.msra.mxu0 0.0
      %1068 = vmatprep.subr.mxu0 0.0
      %1069 = vmatpush1.msra.mxu0 0.0
      %1070 = vmatprep.subr.mxu0 0.0
      %1071 = vmatpush1.msra.mxu0 0.0
      %1072 = vmatprep.subr.mxu0 0.0
      %1073 = vmatpush1.msra.mxu0 0.0
      %1074 = vmatprep.subr.mxu0 0.0
      %1075 = vmatpush1.msra.mxu0 0.0
      %1076 = vmatprep.subr.mxu0 0.0
      %1077 = vmatpush1.msra.mxu0 0.0
      %1078 = vmatprep.subr.mxu0 0.0
      %1079 = vmatpush1.msra.mxu0 0.0
      %1080 = vmatprep.subr.mxu0 0.0
      %1081 = vmatpush1.msra.mxu0 0.0
      %1082 = vmatprep.mubr.f32.mxu0 0.0
      %1083 = vmatmul.mubr.f32.gmra.mrb[0].mxu0 %v939
      %v1084 = vpop.f32.mrb[0].mxu0
      %v1085 = vadd.f32 0.0, %v1084
      %v1086 = vpop.f32.mrb[0].mxu0
      %1087 = vdwg.mxu0
      %v1088 = vadd.f32 %v915, %v1014
      %v1089 = vadd.f32 %v916, %v1016
      %v1090 = vadd.f32 %v917, %v1085
      %v1091 = vld [vmem:[%s225] sm:$0xff]
      %v1092 = vld [vmem:[%s225 + $0x8] sm:$0xff]
      %s1093 = scalar_lea.vmem %s230, 40
      %v1094 = vld [vmem:[%s1093] sm:$0xff]
      %v1097 = vcombine.high %v1091, %v1091
      %v1098 = vcombine.high %v1092, %v1092
      %1099 = vrot.lane.b32.xlu0 %v1091, 108
      %v1100 = vpop.permute.xlu0 %1099
      %1101 = vrot.lane.b32.xlu0 %v1097, 108
      %v1102 = vpop.permute.xlu0 %1101
      %1103 = vrot.lane.b32.xlu0 %v1092, 108
      %v1104 = vpop.permute.xlu0 %1103
      %1105 = vrot.lane.b32.xlu0 %v1098, 108
      %v1106 = vpop.permute.xlu0 %1105
      %vm1107 = vcmask 883712
      %v1108 = vsel %vm1107, %v1100, %v1102
      %v1109 = vsel %vm1107, %v1102, %v1104
      %v1110 = vsel %vm1107, %v1104, %v1106
      %v1112 = vsel %vm267, %v1094, 0
      %v1114 = vsel %vm271, %v1108, 0
      %v1116 = vsel %vm271, %v1109, 0
      %v1118 = vsel %vm271, %v1110, 0
      %1120 = vmatprep.subr.mxu0 %v1116
      %1121 = vmatpush1.msra.mxu0 %v1114
      %1122 = vmatprep.subr.mxu0 0.0
      %1123 = vmatpush1.msra.mxu0 0.0
      %1124 = vmatprep.subr.mxu0 0.0
      %1125 = vmatpush1.msra.mxu0 0.0
      %1126 = vmatprep.subr.mxu0 0.0
      %1127 = vmatpush1.msra.mxu0 0.0
      %1128 = vmatprep.subr.mxu0 0.0
      %1129 = vmatpush1.msra.mxu0 0.0
      %1130 = vmatprep.subr.mxu0 0.0
      %1131 = vmatpush1.msra.mxu0 0.0
      %1132 = vmatprep.subr.mxu0 0.0
      %1133 = vmatpush1.msra.mxu0 0.0
      %1134 = vmatprep.subr.mxu0 0.0
      %1135 = vmatpush1.msra.mxu0 0.0
      %1136 = vmatprep.subr.mxu0 0.0
      %1137 = vmatpush1.msra.mxu0 0.0
      %1138 = vmatprep.subr.mxu0 0.0
      %1139 = vmatpush1.msra.mxu0 0.0
      %1140 = vmatprep.subr.mxu0 0.0
      %1141 = vmatpush1.msra.mxu0 0.0
      %1142 = vmatprep.subr.mxu0 0.0
      %1143 = vmatpush1.msra.mxu0 0.0
      %1144 = vmatprep.subr.mxu0 0.0
      %1145 = vmatpush1.msra.mxu0 0.0
      %1146 = vmatprep.subr.mxu0 0.0
      %1147 = vmatpush1.msra.mxu0 0.0
      %1148 = vmatprep.subr.mxu0 0.0
      %1149 = vmatpush1.msra.mxu0 0.0
      %1150 = vmatprep.subr.mxu0 0.0
      %1151 = vmatpush1.msra.mxu0 0.0
      %1152 = vmatprep.subr.mxu0 0.0
      %1153 = vmatpush1.msra.mxu0 0.0
      %1154 = vmatprep.subr.mxu0 0.0
      %1155 = vmatpush1.msra.mxu0 0.0
      %1156 = vmatprep.subr.mxu0 0.0
      %1157 = vmatpush1.msra.mxu0 0.0
      %1158 = vmatprep.subr.mxu0 0.0
      %1159 = vmatpush1.msra.mxu0 0.0
      %1160 = vmatprep.subr.mxu0 0.0
      %1161 = vmatpush1.msra.mxu0 0.0
      %1162 = vmatprep.subr.mxu0 0.0
      %1163 = vmatpush1.msra.mxu0 0.0
      %1164 = vmatprep.subr.mxu0 0.0
      %1165 = vmatpush1.msra.mxu0 0.0
      %1166 = vmatprep.subr.mxu0 0.0
      %1167 = vmatpush1.msra.mxu0 0.0
      %1168 = vmatprep.subr.mxu0 0.0
      %1169 = vmatpush1.msra.mxu0 0.0
      %1170 = vmatprep.subr.mxu0 0.0
      %1171 = vmatpush1.msra.mxu0 0.0
      %1172 = vmatprep.subr.mxu0 0.0
      %1173 = vmatpush1.msra.mxu0 0.0
      %1174 = vmatprep.subr.mxu0 0.0
      %1175 = vmatpush1.msra.mxu0 0.0
      %1176 = vmatprep.subr.mxu0 0.0
      %1177 = vmatpush1.msra.mxu0 0.0
      %1178 = vmatprep.subr.mxu0 0.0
      %1179 = vmatpush1.msra.mxu0 0.0
      %1180 = vmatprep.subr.mxu0 0.0
      %1181 = vmatpush1.msra.mxu0 0.0
      %1182 = vmatprep.subr.mxu0 0.0
      %1183 = vmatpush1.msra.mxu0 0.0
      %1184 = vmatprep.mubr.f32.mxu0 0.0
      %1185 = vmatmul.mubr.f32.gmra.mrb[0].mxu0 %v1112
      %v1186 = vpop.f32.mrb[0].mxu0
      %v1187 = vadd.f32 0.0, %v1186
      %v1188 = vpop.f32.mrb[0].mxu0
      %v1189 = vadd.f32 0.0, %v1188
      %1190 = vdwg.mxu0
      %1191 = vmatprep.subr.mxu0 0.0
      %1192 = vmatpush1.msra.mxu0 %v1118
      %1193 = vmatprep.subr.mxu0 0.0
      %1194 = vmatpush1.msra.mxu0 0.0
      %1195 = vmatprep.subr.mxu0 0.0
      %1196 = vmatpush1.msra.mxu0 0.0
      %1197 = vmatprep.subr.mxu0 0.0
      %1198 = vmatpush1.msra.mxu0 0.0
      %1199 = vmatprep.subr.mxu0 0.0
      %1200 = vmatpush1.msra.mxu0 0.0
      %1201 = vmatprep.subr.mxu0 0.0
      %1202 = vmatpush1.msra.mxu0 0.0
      %1203 = vmatprep.subr.mxu0 0.0
      %1204 = vmatpush1.msra.mxu0 0.0
      %1205 = vmatprep.subr.mxu0 0.0
      %1206 = vmatpush1.msra.mxu0 0.0
      %1207 = vmatprep.subr.mxu0 0.0
      %1208 = vmatpush1.msra.mxu0 0.0
      %1209 = vmatprep.subr.mxu0 0.0
      %1210 = vmatpush1.msra.mxu0 0.0
      %1211 = vmatprep.subr.mxu0 0.0
      %1212 = vmatpush1.msra.mxu0 0.0
      %1213 = vmatprep.subr.mxu0 0.0
      %1214 = vmatpush1.msra.mxu0 0.0
      %1215 = vmatprep.subr.mxu0 0.0
      %1216 = vmatpush1.msra.mxu0 0.0
      %1217 = vmatprep.subr.mxu0 0.0
      %1218 = vmatpush1.msra.mxu0 0.0
      %1219 = vmatprep.subr.mxu0 0.0
      %1220 = vmatpush1.msra.mxu0 0.0
      %1221 = vmatprep.subr.mxu0 0.0
      %1222 = vmatpush1.msra.mxu0 0.0
      %1223 = vmatprep.subr.mxu0 0.0
      %1224 = vmatpush1.msra.mxu0 0.0
      %1225 = vmatprep.subr.mxu0 0.0
      %1226 = vmatpush1.msra.mxu0 0.0
      %1227 = vmatprep.subr.mxu0 0.0
      %1228 = vmatpush1.msra.mxu0 0.0
      %1229 = vmatprep.subr.mxu0 0.0
      %1230 = vmatpush1.msra.mxu0 0.0
      %1231 = vmatprep.subr.mxu0 0.0
      %1232 = vmatpush1.msra.mxu0 0.0
      %1233 = vmatprep.subr.mxu0 0.0
      %1234 = vmatpush1.msra.mxu0 0.0
      %1235 = vmatprep.subr.mxu0 0.0
      %1236 = vmatpush1.msra.mxu0 0.0
      %1237 = vmatprep.subr.mxu0 0.0
      %1238 = vmatpush1.msra.mxu0 0.0
      %1239 = vmatprep.subr.mxu0 0.0
      %1240 = vmatpush1.msra.mxu0 0.0
      %1241 = vmatprep.subr.mxu0 0.0
      %1242 = vmatpush1.msra.mxu0 0.0
      %1243 = vmatprep.subr.mxu0 0.0
      %1244 = vmatpush1.msra.mxu0 0.0
      %1245 = vmatprep.subr.mxu0 0.0
      %1246 = vmatpush1.msra.mxu0 0.0
      %1247 = vmatprep.subr.mxu0 0.0
      %1248 = vmatpush1.msra.mxu0 0.0
      %1249 = vmatprep.subr.mxu0 0.0
      %1250 = vmatpush1.msra.mxu0 0.0
      %1251 = vmatprep.subr.mxu0 0.0
      %1252 = vmatpush1.msra.mxu0 0.0
      %1253 = vmatprep.subr.mxu0 0.0
      %1254 = vmatpush1.msra.mxu0 0.0
      %1255 = vmatprep.mubr.f32.mxu0 0.0
      %1256 = vmatmul.mubr.f32.gmra.mrb[0].mxu0 %v1112
      %v1257 = vpop.f32.mrb[0].mxu0
      %v1258 = vadd.f32 0.0, %v1257
      %v1259 = vpop.f32.mrb[0].mxu0
      %1260 = vdwg.mxu0
      %v1261 = vadd.f32 %v1088, %v1187
      %v1262 = vadd.f32 %v1089, %v1189
      %v1263 = vadd.f32 %v1090, %v1258
      %v1264 = vld [vmem:[%s225] sm:$0xff]
      %v1265 = vld [vmem:[%s225 + $0x8] sm:$0xff]
      %s1266 = scalar_lea.vmem %s230, 48
      %v1267 = vld [vmem:[%s1266] sm:$0xff]
      %v1270 = vcombine.high %v1264, %v1264
      %v1271 = vcombine.high %v1265, %v1265
      %1272 = vrot.lane.b32.xlu0 %v1264, 92
      %v1273 = vpop.permute.xlu0 %1272
      %1274 = vrot.lane.b32.xlu0 %v1270, 92
      %v1275 = vpop.permute.xlu0 %1274
      %1276 = vrot.lane.b32.xlu0 %v1265, 92
      %v1277 = vpop.permute.xlu0 %1276
      %1278 = vrot.lane.b32.xlu0 %v1271, 92
      %v1279 = vpop.permute.xlu0 %1278
      %vm1280 = vcmask 752640
      %v1281 = vsel %vm1280, %v1273, %v1275
      %v1282 = vsel %vm1280, %v1275, %v1277
      %v1283 = vsel %vm1280, %v1277, %v1279
      %v1285 = vsel %vm267, %v1267, 0
      %v1287 = vsel %vm271, %v1281, 0
      %v1289 = vsel %vm271, %v1282, 0
      %v1291 = vsel %vm271, %v1283, 0
      %1293 = vmatprep.subr.mxu0 %v1289
      %1294 = vmatpush1.msra.mxu0 %v1287
      %1295 = vmatprep.subr.mxu0 0.0
      %1296 = vmatpush1.msra.mxu0 0.0
      %1297 = vmatprep.subr.mxu0 0.0
      %1298 = vmatpush1.msra.mxu0 0.0
      %1299 = vmatprep.subr.mxu0 0.0
      %1300 = vmatpush1.msra.mxu0 0.0
      %1301 = vmatprep.subr.mxu0 0.0
      %1302 = vmatpush1.msra.mxu0 0.0
      %1303 = vmatprep.subr.mxu0 0.0
      %1304 = vmatpush1.msra.mxu0 0.0
      %1305 = vmatprep.subr.mxu0 0.0
      %1306 = vmatpush1.msra.mxu0 0.0
      %1307 = vmatprep.subr.mxu0 0.0
      %1308 = vmatpush1.msra.mxu0 0.0
      %1309 = vmatprep.subr.mxu0 0.0
      %1310 = vmatpush1.msra.mxu0 0.0
      %1311 = vmatprep.subr.mxu0 0.0
      %1312 = vmatpush1.msra.mxu0 0.0
      %1313 = vmatprep.subr.mxu0 0.0
      %1314 = vmatpush1.msra.mxu0 0.0
      %1315 = vmatprep.subr.mxu0 0.0
      %1316 = vmatpush1.msra.mxu0 0.0
      %1317 = vmatprep.subr.mxu0 0.0
      %1318 = vmatpush1.msra.mxu0 0.0
      %1319 = vmatprep.subr.mxu0 0.0
      %1320 = vmatpush1.msra.mxu0 0.0
      %1321 = vmatprep.subr.mxu0 0.0
      %1322 = vmatpush1.msra.mxu0 0.0
      %1323 = vmatprep.subr.mxu0 0.0
      %1324 = vmatpush1.msra.mxu0 0.0
      %1325 = vmatprep.subr.mxu0 0.0
      %1326 = vmatpush1.msra.mxu0 0.0
      %1327 = vmatprep.subr.mxu0 0.0
      %1328 = vmatpush1.msra.mxu0 0.0
      %1329 = vmatprep.subr.mxu0 0.0
      %1330 = vmatpush1.msra.mxu0 0.0
      %1331 = vmatprep.subr.mxu0 0.0
      %1332 = vmatpush1.msra.mxu0 0.0
      %1333 = vmatprep.subr.mxu0 0.0
      %1334 = vmatpush1.msra.mxu0 0.0
      %1335 = vmatprep.subr.mxu0 0.0
      %1336 = vmatpush1.msra.mxu0 0.0
      %1337 = vmatprep.subr.mxu0 0.0
      %1338 = vmatpush1.msra.mxu0 0.0
      %1339 = vmatprep.subr.mxu0 0.0
      %1340 = vmatpush1.msra.mxu0 0.0
      %1341 = vmatprep.subr.mxu0 0.0
      %1342 = vmatpush1.msra.mxu0 0.0
      %1343 = vmatprep.subr.mxu0 0.0
      %1344 = vmatpush1.msra.mxu0 0.0
      %1345 = vmatprep.subr.mxu0 0.0
      %1346 = vmatpush1.msra.mxu0 0.0
      %1347 = vmatprep.subr.mxu0 0.0
      %1348 = vmatpush1.msra.mxu0 0.0
      %1349 = vmatprep.subr.mxu0 0.0
      %1350 = vmatpush1.msra.mxu0 0.0
      %1351 = vmatprep.subr.mxu0 0.0
      %1352 = vmatpush1.msra.mxu0 0.0
      %1353 = vmatprep.subr.mxu0 0.0
      %1354 = vmatpush1.msra.mxu0 0.0
      %1355 = vmatprep.subr.mxu0 0.0
      %1356 = vmatpush1.msra.mxu0 0.0
      %1357 = vmatprep.mubr.f32.mxu0 0.0
      %1358 = vmatmul.mubr.f32.gmra.mrb[0].mxu0 %v1285
      %v1359 = vpop.f32.mrb[0].mxu0
      %v1360 = vadd.f32 0.0, %v1359
      %v1361 = vpop.f32.mrb[0].mxu0
      %v1362 = vadd.f32 0.0, %v1361
      %1363 = vdwg.mxu0
      %1364 = vmatprep.subr.mxu0 0.0
      %1365 = vmatpush1.msra.mxu0 %v1291
      %1366 = vmatprep.subr.mxu0 0.0
      %1367 = vmatpush1.msra.mxu0 0.0
      %1368 = vmatprep.subr.mxu0 0.0
      %1369 = vmatpush1.msra.mxu0 0.0
      %1370 = vmatprep.subr.mxu0 0.0
      %1371 = vmatpush1.msra.mxu0 0.0
      %1372 = vmatprep.subr.mxu0 0.0
      %1373 = vmatpush1.msra.mxu0 0.0
      %1374 = vmatprep.subr.mxu0 0.0
      %1375 = vmatpush1.msra.mxu0 0.0
      %1376 = vmatprep.subr.mxu0 0.0
      %1377 = vmatpush1.msra.mxu0 0.0
      %1378 = vmatprep.subr.mxu0 0.0
      %1379 = vmatpush1.msra.mxu0 0.0
      %1380 = vmatprep.subr.mxu0 0.0
      %1381 = vmatpush1.msra.mxu0 0.0
      %1382 = vmatprep.subr.mxu0 0.0
      %1383 = vmatpush1.msra.mxu0 0.0
      %1384 = vmatprep.subr.mxu0 0.0
      %1385 = vmatpush1.msra.mxu0 0.0
      %1386 = vmatprep.subr.mxu0 0.0
      %1387 = vmatpush1.msra.mxu0 0.0
      %1388 = vmatprep.subr.mxu0 0.0
      %1389 = vmatpush1.msra.mxu0 0.0
      %1390 = vmatprep.subr.mxu0 0.0
      %1391 = vmatpush1.msra.mxu0 0.0
      %1392 = vmatprep.subr.mxu0 0.0
      %1393 = vmatpush1.msra.mxu0 0.0
      %1394 = vmatprep.subr.mxu0 0.0
      %1395 = vmatpush1.msra.mxu0 0.0
      %1396 = vmatprep.subr.mxu0 0.0
      %1397 = vmatpush1.msra.mxu0 0.0
      %1398 = vmatprep.subr.mxu0 0.0
      %1399 = vmatpush1.msra.mxu0 0.0
      %1400 = vmatprep.subr.mxu0 0.0
      %1401 = vmatpush1.msra.mxu0 0.0
      %1402 = vmatprep.subr.mxu0 0.0
      %1403 = vmatpush1.msra.mxu0 0.0
      %1404 = vmatprep.subr.mxu0 0.0
      %1405 = vmatpush1.msra.mxu0 0.0
      %1406 = vmatprep.subr.mxu0 0.0
      %1407 = vmatpush1.msra.mxu0 0.0
      %1408 = vmatprep.subr.mxu0 0.0
      %1409 = vmatpush1.msra.mxu0 0.0
      %1410 = vmatprep.subr.mxu0 0.0
      %1411 = vmatpush1.msra.mxu0 0.0
      %1412 = vmatprep.subr.mxu0 0.0
      %1413 = vmatpush1.msra.mxu0 0.0
      %1414 = vmatprep.subr.mxu0 0.0
      %1415 = vmatpush1.msra.mxu0 0.0
      %1416 = vmatprep.subr.mxu0 0.0
      %1417 = vmatpush1.msra.mxu0 0.0
      %1418 = vmatprep.subr.mxu0 0.0
      %1419 = vmatpush1.msra.mxu0 0.0
      %1420 = vmatprep.subr.mxu0 0.0
      %1421 = vmatpush1.msra.mxu0 0.0
      %1422 = vmatprep.subr.mxu0 0.0
      %1423 = vmatpush1.msra.mxu0 0.0
      %1424 = vmatprep.subr.mxu0 0.0
      %1425 = vmatpush1.msra.mxu0 0.0
      %1426 = vmatprep.subr.mxu0 0.0
      %1427 = vmatpush1.msra.mxu0 0.0
      %1428 = vmatprep.mubr.f32.mxu0 0.0
      %1429 = vmatmul.mubr.f32.gmra.mrb[0].mxu0 %v1285
      %v1430 = vpop.f32.mrb[0].mxu0
      %v1431 = vadd.f32 0.0, %v1430
      %v1432 = vpop.f32.mrb[0].mxu0
      %1433 = vdwg.mxu0
      %v1434 = vadd.f32 %v1261, %v1360
      %v1435 = vadd.f32 %v1262, %v1362
      %v1436 = vadd.f32 %v1263, %v1431
      %v1437 = vld [vmem:[%s225] sm:$0xff]
      %v1438 = vld [vmem:[%s225 + $0x8] sm:$0xff]
      %s1439 = scalar_lea.vmem %s230, 56
      %v1440 = vld [vmem:[%s1439] sm:$0xff]
      %v1443 = vcombine.high %v1437, %v1437
      %v1444 = vcombine.high %v1438, %v1438
      %1445 = vrot.lane.b32.xlu0 %v1437, 91
      %v1446 = vpop.permute.xlu0 %1445
      %1447 = vrot.lane.b32.xlu0 %v1443, 91
      %v1448 = vpop.permute.xlu0 %1447
      %1449 = vrot.lane.b32.xlu0 %v1438, 91
      %v1450 = vpop.permute.xlu0 %1449
      %1451 = vrot.lane.b32.xlu0 %v1444, 91
      %v1452 = vpop.permute.xlu0 %1451
      %vm1453 = vcmask 744448
      %v1454 = vsel %vm1453, %v1446, %v1448
      %v1455 = vsel %vm1453, %v1448, %v1450
      %v1456 = vsel %vm1453, %v1450, %v1452
      %v1458 = vsel %vm267, %v1440, 0
      %v1460 = vsel %vm271, %v1454, 0
      %v1462 = vsel %vm271, %v1455, 0
      %v1464 = vsel %vm271, %v1456, 0
      %1466 = vmatprep.subr.mxu0 %v1462
      %1467 = vmatpush1.msra.mxu0 %v1460
      %1468 = vmatprep.subr.mxu0 0.0
      %1469 = vmatpush1.msra.mxu0 0.0
      %1470 = vmatprep.subr.mxu0 0.0
      %1471 = vmatpush1.msra.mxu0 0.0
      %1472 = vmatprep.subr.mxu0 0.0
      %1473 = vmatpush1.msra.mxu0 0.0
      %1474 = vmatprep.subr.mxu0 0.0
      %1475 = vmatpush1.msra.mxu0 0.0
      %1476 = vmatprep.subr.mxu0 0.0
      %1477 = vmatpush1.msra.mxu0 0.0
      %1478 = vmatprep.subr.mxu0 0.0
      %1479 = vmatpush1.msra.mxu0 0.0
      %1480 = vmatprep.subr.mxu0 0.0
      %1481 = vmatpush1.msra.mxu0 0.0
      %1482 = vmatprep.subr.mxu0 0.0
      %1483 = vmatpush1.msra.mxu0 0.0
      %1484 = vmatprep.subr.mxu0 0.0
      %1485 = vmatpush1.msra.mxu0 0.0
      %1486 = vmatprep.subr.mxu0 0.0
      %1487 = vmatpush1.msra.mxu0 0.0
      %1488 = vmatprep.subr.mxu0 0.0
      %1489 = vmatpush1.msra.mxu0 0.0
      %1490 = vmatprep.subr.mxu0 0.0
      %1491 = vmatpush1.msra.mxu0 0.0
      %1492 = vmatprep.subr.mxu0 0.0
      %1493 = vmatpush1.msra.mxu0 0.0
      %1494 = vmatprep.subr.mxu0 0.0
      %1495 = vmatpush1.msra.mxu0 0.0
      %1496 = vmatprep.subr.mxu0 0.0
      %1497 = vmatpush1.msra.mxu0 0.0
      %1498 = vmatprep.subr.mxu0 0.0
      %1499 = vmatpush1.msra.mxu0 0.0
      %1500 = vmatprep.subr.mxu0 0.0
      %1501 = vmatpush1.msra.mxu0 0.0
      %1502 = vmatprep.subr.mxu0 0.0
      %1503 = vmatpush1.msra.mxu0 0.0
      %1504 = vmatprep.subr.mxu0 0.0
      %1505 = vmatpush1.msra.mxu0 0.0
      %1506 = vmatprep.subr.mxu0 0.0
      %1507 = vmatpush1.msra.mxu0 0.0
      %1508 = vmatprep.subr.mxu0 0.0
      %1509 = vmatpush1.msra.mxu0 0.0
      %1510 = vmatprep.subr.mxu0 0.0
      %1511 = vmatpush1.msra.mxu0 0.0
      %1512 = vmatprep.subr.mxu0 0.0
      %1513 = vmatpush1.msra.mxu0 0.0
      %1514 = vmatprep.subr.mxu0 0.0
      %1515 = vmatpush1.msra.mxu0 0.0
      %1516 = vmatprep.subr.mxu0 0.0
      %1517 = vmatpush1.msra.mxu0 0.0
      %1518 = vmatprep.subr.mxu0 0.0
      %1519 = vmatpush1.msra.mxu0 0.0
      %1520 = vmatprep.subr.mxu0 0.0
      %1521 = vmatpush1.msra.mxu0 0.0
      %1522 = vmatprep.subr.mxu0 0.0
      %1523 = vmatpush1.msra.mxu0 0.0
      %1524 = vmatprep.subr.mxu0 0.0
      %1525 = vmatpush1.msra.mxu0 0.0
      %1526 = vmatprep.subr.mxu0 0.0
      %1527 = vmatpush1.msra.mxu0 0.0
      %1528 = vmatprep.subr.mxu0 0.0
      %1529 = vmatpush1.msra.mxu0 0.0
      %1530 = vmatprep.mubr.f32.mxu0 0.0
      %1531 = vmatmul.mubr.f32.gmra.mrb[0].mxu0 %v1458
      %v1532 = vpop.f32.mrb[0].mxu0
      %v1533 = vadd.f32 0.0, %v1532
      %v1534 = vpop.f32.mrb[0].mxu0
      %v1535 = vadd.f32 0.0, %v1534
      %1536 = vdwg.mxu0
      %1537 = vmatprep.subr.mxu0 0.0
      %1538 = vmatpush1.msra.mxu0 %v1464
      %1539 = vmatprep.subr.mxu0 0.0
      %1540 = vmatpush1.msra.mxu0 0.0
      %1541 = vmatprep.subr.mxu0 0.0
      %1542 = vmatpush1.msra.mxu0 0.0
      %1543 = vmatprep.subr.mxu0 0.0
      %1544 = vmatpush1.msra.mxu0 0.0
      %1545 = vmatprep.subr.mxu0 0.0
      %1546 = vmatpush1.msra.mxu0 0.0
      %1547 = vmatprep.subr.mxu0 0.0
      %1548 = vmatpush1.msra.mxu0 0.0
      %1549 = vmatprep.subr.mxu0 0.0
      %1550 = vmatpush1.msra.mxu0 0.0
      %1551 = vmatprep.subr.mxu0 0.0
      %1552 = vmatpush1.msra.mxu0 0.0
      %1553 = vmatprep.subr.mxu0 0.0
      %1554 = vmatpush1.msra.mxu0 0.0
      %1555 = vmatprep.subr.mxu0 0.0
      %1556 = vmatpush1.msra.mxu0 0.0
      %1557 = vmatprep.subr.mxu0 0.0
      %1558 = vmatpush1.msra.mxu0 0.0
      %1559 = vmatprep.subr.mxu0 0.0
      %1560 = vmatpush1.msra.mxu0 0.0
      %1561 = vmatprep.subr.mxu0 0.0
      %1562 = vmatpush1.msra.mxu0 0.0
      %1563 = vmatprep.subr.mxu0 0.0
      %1564 = vmatpush1.msra.mxu0 0.0
      %1565 = vmatprep.subr.mxu0 0.0
      %1566 = vmatpush1.msra.mxu0 0.0
      %1567 = vmatprep.subr.mxu0 0.0
      %1568 = vmatpush1.msra.mxu0 0.0
      %1569 = vmatprep.subr.mxu0 0.0
      %1570 = vmatpush1.msra.mxu0 0.0
      %1571 = vmatprep.subr.mxu0 0.0
      %1572 = vmatpush1.msra.mxu0 0.0
      %1573 = vmatprep.subr.mxu0 0.0
      %1574 = vmatpush1.msra.mxu0 0.0
      %1575 = vmatprep.subr.mxu0 0.0
      %1576 = vmatpush1.msra.mxu0 0.0
      %1577 = vmatprep.subr.mxu0 0.0
      %1578 = vmatpush1.msra.mxu0 0.0
      %1579 = vmatprep.subr.mxu0 0.0
      %1580 = vmatpush1.msra.mxu0 0.0
      %1581 = vmatprep.subr.mxu0 0.0
      %1582 = vmatpush1.msra.mxu0 0.0
      %1583 = vmatprep.subr.mxu0 0.0
      %1584 = vmatpush1.msra.mxu0 0.0
      %1585 = vmatprep.subr.mxu0 0.0
      %1586 = vmatpush1.msra.mxu0 0.0
      %1587 = vmatprep.subr.mxu0 0.0
      %1588 = vmatpush1.msra.mxu0 0.0
      %1589 = vmatprep.subr.mxu0 0.0
      %1590 = vmatpush1.msra.mxu0 0.0
      %1591 = vmatprep.subr.mxu0 0.0
      %1592 = vmatpush1.msra.mxu0 0.0
      %1593 = vmatprep.subr.mxu0 0.0
      %1594 = vmatpush1.msra.mxu0 0.0
      %1595 = vmatprep.subr.mxu0 0.0
      %1596 = vmatpush1.msra.mxu0 0.0
      %1597 = vmatprep.subr.mxu0 0.0
      %1598 = vmatpush1.msra.mxu0 0.0
      %1599 = vmatprep.subr.mxu0 0.0
      %1600 = vmatpush1.msra.mxu0 0.0
      %1601 = vmatprep.mubr.f32.mxu0 0.0
      %1602 = vmatmul.mubr.f32.gmra.mrb[0].mxu0 %v1458
      %v1603 = vpop.f32.mrb[0].mxu0
      %v1604 = vadd.f32 0.0, %v1603
      %v1605 = vpop.f32.mrb[0].mxu0
      %1606 = vdwg.mxu0
      %v1607 = vadd.f32 %v1434, %v1533
      %v1608 = vadd.f32 %v1435, %v1535
      %v1609 = vadd.f32 %v1436, %v1604
      %v1610 = vld [vmem:[%s225] sm:$0xff]
      %v1611 = vld [vmem:[%s225 + $0x8] sm:$0xff]
      %s1612 = scalar_lea.vmem %s230, 64
      %v1613 = vld [vmem:[%s1612] sm:$0xff]
      %v1616 = vcombine.high %v1610, %v1610
      %v1617 = vcombine.high %v1611, %v1611
      %1618 = vrot.lane.b32.xlu0 %v1610, 90
      %v1619 = vpop.permute.xlu0 %1618
      %1620 = vrot.lane.b32.xlu0 %v1616, 90
      %v1621 = vpop.permute.xlu0 %1620
      %1622 = vrot.lane.b32.xlu0 %v1611, 90
      %v1623 = vpop.permute.xlu0 %1622
      %1624 = vrot.lane.b32.xlu0 %v1617, 90
      %v1625 = vpop.permute.xlu0 %1624
      %vm1626 = vcmask 736256
      %v1627 = vsel %vm1626, %v1619, %v1621
      %v1628 = vsel %vm1626, %v1621, %v1623
      %v1629 = vsel %vm1626, %v1623, %v1625
      %v1631 = vsel %vm267, %v1613, 0
      %v1633 = vsel %vm271, %v1627, 0
      %v1635 = vsel %vm271, %v1628, 0
      %v1637 = vsel %vm271, %v1629, 0
      %1639 = vmatprep.subr.mxu0 %v1635
      %1640 = vmatpush1.msra.mxu0 %v1633
      %1641 = vmatprep.subr.mxu0 0.0
      %1642 = vmatpush1.msra.mxu0 0.0
      %1643 = vmatprep.subr.mxu0 0.0
      %1644 = vmatpush1.msra.mxu0 0.0
      %1645 = vmatprep.subr.mxu0 0.0
      %1646 = vmatpush1.msra.mxu0 0.0
      %1647 = vmatprep.subr.mxu0 0.0
      %1648 = vmatpush1.msra.mxu0 0.0
      %1649 = vmatprep.subr.mxu0 0.0
      %1650 = vmatpush1.msra.mxu0 0.0
      %1651 = vmatprep.subr.mxu0 0.0
      %1652 = vmatpush1.msra.mxu0 0.0
      %1653 = vmatprep.subr.mxu0 0.0
      %1654 = vmatpush1.msra.mxu0 0.0
      %1655 = vmatprep.subr.mxu0 0.0
      %1656 = vmatpush1.msra.mxu0 0.0
      %1657 = vmatprep.subr.mxu0 0.0
      %1658 = vmatpush1.msra.mxu0 0.0
      %1659 = vmatprep.subr.mxu0 0.0
      %1660 = vmatpush1.msra.mxu0 0.0
      %1661 = vmatprep.subr.mxu0 0.0
      %1662 = vmatpush1.msra.mxu0 0.0
      %1663 = vmatprep.subr.mxu0 0.0
      %1664 = vmatpush1.msra.mxu0 0.0
      %1665 = vmatprep.subr.mxu0 0.0
      %1666 = vmatpush1.msra.mxu0 0.0
      %1667 = vmatprep.subr.mxu0 0.0
      %1668 = vmatpush1.msra.mxu0 0.0
      %1669 = vmatprep.subr.mxu0 0.0
      %1670 = vmatpush1.msra.mxu0 0.0
      %1671 = vmatprep.subr.mxu0 0.0
      %1672 = vmatpush1.msra.mxu0 0.0
      %1673 = vmatprep.subr.mxu0 0.0
      %1674 = vmatpush1.msra.mxu0 0.0
      %1675 = vmatprep.subr.mxu0 0.0
      %1676 = vmatpush1.msra.mxu0 0.0
      %1677 = vmatprep.subr.mxu0 0.0
      %1678 = vmatpush1.msra.mxu0 0.0
      %1679 = vmatprep.subr.mxu0 0.0
      %1680 = vmatpush1.msra.mxu0 0.0
      %1681 = vmatprep.subr.mxu0 0.0
      %1682 = vmatpush1.msra.mxu0 0.0
      %1683 = vmatprep.subr.mxu0 0.0
      %1684 = vmatpush1.msra.mxu0 0.0
      %1685 = vmatprep.subr.mxu0 0.0
      %1686 = vmatpush1.msra.mxu0 0.0
      %1687 = vmatprep.subr.mxu0 0.0
      %1688 = vmatpush1.msra.mxu0 0.0
      %1689 = vmatprep.subr.mxu0 0.0
      %1690 = vmatpush1.msra.mxu0 0.0
      %1691 = vmatprep.subr.mxu0 0.0
      %1692 = vmatpush1.msra.mxu0 0.0
      %1693 = vmatprep.subr.mxu0 0.0
      %1694 = vmatpush1.msra.mxu0 0.0
      %1695 = vmatprep.subr.mxu0 0.0
      %1696 = vmatpush1.msra.mxu0 0.0
      %1697 = vmatprep.subr.mxu0 0.0
      %1698 = vmatpush1.msra.mxu0 0.0
      %1699 = vmatprep.subr.mxu0 0.0
      %1700 = vmatpush1.msra.mxu0 0.0
      %1701 = vmatprep.subr.mxu0 0.0
      %1702 = vmatpush1.msra.mxu0 0.0
      %1703 = vmatprep.mubr.f32.mxu0 0.0
      %1704 = vmatmul.mubr.f32.gmra.mrb[0].mxu0 %v1631
      %v1705 = vpop.f32.mrb[0].mxu0
      %v1706 = vadd.f32 0.0, %v1705
      %v1707 = vpop.f32.mrb[0].mxu0
      %v1708 = vadd.f32 0.0, %v1707
      %1709 = vdwg.mxu0
      %1710 = vmatprep.subr.mxu0 0.0
      %1711 = vmatpush1.msra.mxu0 %v1637
      %1712 = vmatprep.subr.mxu0 0.0
      %1713 = vmatpush1.msra.mxu0 0.0
      %1714 = vmatprep.subr.mxu0 0.0
      %1715 = vmatpush1.msra.mxu0 0.0
      %1716 = vmatprep.subr.mxu0 0.0
      %1717 = vmatpush1.msra.mxu0 0.0
      %1718 = vmatprep.subr.mxu0 0.0
      %1719 = vmatpush1.msra.mxu0 0.0
      %1720 = vmatprep.subr.mxu0 0.0
      %1721 = vmatpush1.msra.mxu0 0.0
      %1722 = vmatprep.subr.mxu0 0.0
      %1723 = vmatpush1.msra.mxu0 0.0
      %1724 = vmatprep.subr.mxu0 0.0
      %1725 = vmatpush1.msra.mxu0 0.0
      %1726 = vmatprep.subr.mxu0 0.0
      %1727 = vmatpush1.msra.mxu0 0.0
      %1728 = vmatprep.subr.mxu0 0.0
      %1729 = vmatpush1.msra.mxu0 0.0
      %1730 = vmatprep.subr.mxu0 0.0
      %1731 = vmatpush1.msra.mxu0 0.0
      %1732 = vmatprep.subr.mxu0 0.0
      %1733 = vmatpush1.msra.mxu0 0.0
      %1734 = vmatprep.subr.mxu0 0.0
      %1735 = vmatpush1.msra.mxu0 0.0
      %1736 = vmatprep.subr.mxu0 0.0
      %1737 = vmatpush1.msra.mxu0 0.0
      %1738 = vmatprep.subr.mxu0 0.0
      %1739 = vmatpush1.msra.mxu0 0.0
      %1740 = vmatprep.subr.mxu0 0.0
      %1741 = vmatpush1.msra.mxu0 0.0
      %1742 = vmatprep.subr.mxu0 0.0
      %1743 = vmatpush1.msra.mxu0 0.0
      %1744 = vmatprep.subr.mxu0 0.0
      %1745 = vmatpush1.msra.mxu0 0.0
      %1746 = vmatprep.subr.mxu0 0.0
      %1747 = vmatpush1.msra.mxu0 0.0
      %1748 = vmatprep.subr.mxu0 0.0
      %1749 = vmatpush1.msra.mxu0 0.0
      %1750 = vmatprep.subr.mxu0 0.0
      %1751 = vmatpush1.msra.mxu0 0.0
      %1752 = vmatprep.subr.mxu0 0.0
      %1753 = vmatpush1.msra.mxu0 0.0
      %1754 = vmatprep.subr.mxu0 0.0
      %1755 = vmatpush1.msra.mxu0 0.0
      %1756 = vmatprep.subr.mxu0 0.0
      %1757 = vmatpush1.msra.mxu0 0.0
      %1758 = vmatprep.subr.mxu0 0.0
      %1759 = vmatpush1.msra.mxu0 0.0
      %1760 = vmatprep.subr.mxu0 0.0
      %1761 = vmatpush1.msra.mxu0 0.0
      %1762 = vmatprep.subr.mxu0 0.0
      %1763 = vmatpush1.msra.mxu0 0.0
      %1764 = vmatprep.subr.mxu0 0.0
      %1765 = vmatpush1.msra.mxu0 0.0
      %1766 = vmatprep.subr.mxu0 0.0
      %1767 = vmatpush1.msra.mxu0 0.0
      %1768 = vmatprep.subr.mxu0 0.0
      %1769 = vmatpush1.msra.mxu0 0.0
      %1770 = vmatprep.subr.mxu0 0.0
      %1771 = vmatpush1.msra.mxu0 0.0
      %1772 = vmatprep.subr.mxu0 0.0
      %1773 = vmatpush1.msra.mxu0 0.0
      %1774 = vmatprep.mubr.f32.mxu0 0.0
      %1775 = vmatmul.mubr.f32.gmra.mrb[0].mxu0 %v1631
      %v1776 = vpop.f32.mrb[0].mxu0
      %v1777 = vadd.f32 0.0, %v1776
      %v1778 = vpop.f32.mrb[0].mxu0
      %1779 = vdwg.mxu0
      %v1780 = vadd.f32 %v1607, %v1706
      %v1781 = vadd.f32 %v1608, %v1708
      %v1782 = vadd.f32 %v1609, %v1777
      %v1783 = vld [vmem:[%s234] sm:$0xff]
      %1785 = vset.pattern.permute.xlu0 0
      %1786 = vperm.xlu0 %1785, %v1783
      %v1787 = vpop.permute.xlu0 %1786
      %v1789 = vadd.f32 %v1780, %v1787
      %v1790 = vadd.f32 %v1781, %v1787
      %v1791 = vadd.f32 %v1782, %v1787
      %1792 = vst [vmem:[%s243] sm:$0xff] %v1789
      %1793 = vst [vmem:[%s243 + $0x8] sm:$0xff] %v1790
      %1794 = vst [vmem:[%s243 + $0x10] sm:$0xff] %v1791
      %p1795 = scmp.lt.s32.totalorder %s18, 1
      %s1796 = scalar_select %p1795, %s18, 1
      %p1797 = scmp.lt.s32.totalorder %s19, 1
      %s1798 = scalar_select %p1797, %s19, 1
      %s1799 = smul.addr %s1798, 3
      %s1800 = smul.addr %s1796, 6
      %s1801 = sadd.s32 %s1799, %s1800
      %s1802 = smul.addr %s1801, 8
      %s1803 = scalar_lea.vmem %s3, %s1802
      // Predicated region
      $region33: #{_fused_forward.1} parent=31 // pred_check
        %p1804 = pneg %p126
      $region34: #{_fused_forward.1} parent=31 // pred_check_branch
        %1806 = sbr.rel (%p1804) target = $region36
      $region35: #{_fused_forward.1} parent=31 // pred_region
        _
      $region36: #{_fused_forward.1} parent=31 // pred_fallthru
        _
    $region32: #{_fused_forward.1} parent=5 // pred_fallthru
      _
    %p1807 = scmp.le.s32.totalorder 2, %s9
    // Predicated region
    $region37: #{_fused_forward.1} parent=5 // pred_check
      %p1808 = pneg %p1807
    $region38: #{_fused_forward.1} parent=5 // pred_check_branch
      %1810 = sbr.rel (%p1808) target = $region40
    $region39: #{_fused_forward.1} parent=5 // pred_region
      %s1811 = ssub.s32 %s9, 2
      // Predicated region
      $region41: #{_fused_forward.1} parent=39 // pred_check
        %p1812 = pneg %p132
      $region42: #{_fused_forward.1} parent=39 // pred_check_branch
        %1814 = sbr.rel (%p1812) target = $region44
      $region43: #{_fused_forward.1} parent=39 // pred_region
        %p1815 = scmp.lt.s32.totalorder %s20, 1
        %s1816 = scalar_select %p1815, %s20, 1
        %p1817 = scmp.lt.s32.totalorder %s21, 1
        %s1818 = scalar_select %p1817, %s21, 1
        %s1819 = smul.addr %s1818, 3
        %s1820 = smul.addr %s1816, 6
        %s1821 = sadd.s32 %s1819, %s1820
        %s1822 = smul.addr %s1821, 8
        %s1823 = scalar_lea.vmem %s3, %s1822
      $region44: #{_fused_forward.1} parent=39 // pred_fallthru
        _
    $region40: #{_fused_forward.1} parent=5 // pred_fallthru
      _
  $region6: #{_fused_forward.1} parent=0 // loop_footer
    %s13 = sadd.s32 1, %s9
  $region7: #{_fused_forward.1} parent=0 // loop_footer_branch
    %8 = sbr.rel target = $region3
  $region8: #{_fused_forward.1} parent=0 // loop_exit
    _

</llo_original>
